<compile_context>
chip_gen: v7x
topology: tpu7x:2x2x1
jax: 0.10.0
libtpu: 0.0.40
codegen_flags: <defaults>
</compile_context>

<pallas_src>
import functools

import jax
import jax.numpy as jnp
from jax import lax
from jax.experimental import pallas as pl
from jax.experimental.pallas import tpu as pltpu


# ----------------------------------------------------------------------------
# Pallas kernel: full forward pass (LSTM time loop + FC head) in VMEM.
# ----------------------------------------------------------------------------
def _lstm_regressor_kernel(num_layers, num_fc, hidden_size, *refs):
    # refs layout:
    #   mask_ref   (B_pad, 1)   f32, 1/B_real on real rows, 0 on padding rows
    #   x_ref      (T*B_pad, F) bf16, time-major rows (t-major, then batch)
    #   per LSTM layer: wih_T (Fin, 4H) bf16, whh_T (H, 4H) bf16, bias (1, 4H) f32
    #   per FC layer:   w_T (Din_pad, Dout_pad) bf16, b, gamma, beta (1, Dout_pad) f32
    #   head:      w_out_T (Dlast_pad, O_pad) bf16, b_out (1, O_pad) f32
    #   out_ref    (B_pad, O_pad) f32
    idx = 0
    mask_ref = refs[idx]; idx += 1
    x_ref = refs[idx]; idx += 1
    lstm_refs = []
    for _ in range(num_layers):
        lstm_refs.append(tuple(refs[idx:idx + 3]))
        idx += 3
    fc_refs = []
    for _ in range(num_fc):
        fc_refs.append(tuple(refs[idx:idx + 4]))
        idx += 4
    w_out_ref = refs[idx]
    b_out_ref = refs[idx + 1]
    out_ref = refs[idx + 2]

    H = hidden_size
    Bp = mask_ref.shape[0]
    T = x_ref.shape[0] // Bp
    f32 = jnp.float32
    cdt = lstm_refs[0][0].dtype        # MXU operand dtype (bf16); acc is f32

    wih0_ref, whh0_ref, b0_ref = lstm_refs[0]

    # ---- Hoisted layer-0 input projection: ONE (T*Bp, F) x (F, 4H) MXU matmul
    # instead of T tiny matmuls inside the serial recurrence. x is already
    # bf16 (cast in the wrapper), so no in-kernel cast pass.
    # TODO(synk): at production T, compute this in time chunks (or keep it in
    # bf16) to bound VMEM residency on v7x.
    pre_g0 = jnp.dot(x_ref[...], wih0_ref[...],
                     preferred_element_type=f32) + b0_ref[...]       # (T*Bp, 4H)

    def cell(gates, c):
        # PyTorch gate order: i, f, g, o.
        # One full-width sigmoid over the whole (Bp, 4H) slab (i/f/o sliced
        # from it), one tanh on the g quarter, one tanh on c_new:
        # 3 EUP pushes per layer-step (was 5).
        sig = jax.nn.sigmoid(gates)
        i_g = sig[:, 0 * H:1 * H]
        f_g = sig[:, 1 * H:2 * H]
        o_g = sig[:, 3 * H:4 * H]
        g_g = jnp.tanh(gates[:, 2 * H:3 * H])
        c_new = f_g * c + i_g * g_g
        h_new = o_g * jnp.tanh(c_new)
        return h_new, c_new

    # NOTE: padded batch rows accumulate nonzero h/c through the recurrence
    # (sigmoid(bias) etc.); they are masked out of BN stats below and stripped
    # by the wrapper. Do NOT return hs/cs without re-masking.
    hs = [jnp.zeros((Bp, H), f32) for _ in range(num_layers)]
    cs = [jnp.zeros((Bp, H), f32) for _ in range(num_layers)]

    # ---- Fully unrolled time loop (T small & static): the scheduler overlaps
    # step t+1's MXU pushes with step t's EUP/VPU gate math.
    for t in range(T):
        # Layer 0: only the recurrent matmul remains on the critical path.
        gates0 = pre_g0[t * Bp:(t + 1) * Bp, :] + jnp.dot(
            hs[0].astype(cdt), whh0_ref[...], preferred_element_type=f32)
        hs[0], cs[0] = cell(gates0, cs[0])
        inp = hs[0]
        # Deeper layers: two independent MXU dots (no per-step lane concat).
        for l in range(1, num_layers):
            wih_ref, whh_ref, b_ref = lstm_refs[l]
            gates = (jnp.dot(inp.astype(cdt), wih_ref[...],
                             preferred_element_type=f32)
                     + jnp.dot(hs[l].astype(cdt), whh_ref[...],
                               preferred_element_type=f32)
                     + b_ref[...])
            hs[l], cs[l] = cell(gates, cs[l])
            inp = hs[l]

    z = hs[num_layers - 1]        # == lstm_out[:, -1, :]   (Bp, H)

    # ---- FC head: [Linear -> BatchNorm1d(train) -> ReLU]*num_fc -> Linear.
    # BN stats over real batch rows only (mask = 1/B or 0), two-pass variance
    # (mean subtracted before squaring), rsqrt on the EUP. Padded lanes stay
    # exactly 0 (zero weights/bias/gamma/beta); padded rows carry junk but are
    # excluded from stats and stripped by the wrapper.
    eps = 1e-5
    msk = mask_ref[...]           # (Bp, 1)
    for (w_ref, b_ref, g_ref, be_ref) in fc_refs:
        z = jnp.dot(z.astype(cdt), w_ref[...],
                    preferred_element_type=f32) + b_ref[...]
        mean = jnp.sum(z * msk, axis=0, keepdims=True)
        d = z - mean
        var = jnp.sum(d * d * msk, axis=0, keepdims=True)   # biased (train BN)
        z = g_ref[...] * d * lax.rsqrt(var + eps) + be_ref[...]
        z = jnp.maximum(z, 0.0)   # ReLU

    out = jnp.dot(z.astype(cdt), w_out_ref[...],
                  preferred_element_type=f32) + b_out_ref[...]
    out_ref[...] = out.astype(out_ref.dtype)   # lane-dense (Bp, 128) store


# ----------------------------------------------------------------------------
# Wrapper: parameter plumbing + pallas_call.
# ----------------------------------------------------------------------------
def _round_up(x, m):
    return (x + m - 1) // m * m


def lstm_regressor_forward(x, params, mxu_dtype=jnp.bfloat16):
    """x: (B, T, in_features) float32.  Returns (B, out_features) float32."""
    lstm_p, fc_p, (w_out_T, b_out) = params
    B, T, F = x.shape
    H = lstm_p[0][1].shape[0]            # whh_T is (H, 4H)
    O = w_out_T.shape[1]

    Bp = _round_up(max(B, 8), 8)         # fill all 8 f32 sublanes per vreg
    Op = _round_up(max(O, 128), 128)     # lane-dense final store

    cast = lambda a: a.astype(mxu_dtype)
    f32 = jnp.float32

    # Time-major, batch-padded, bf16 input flattened to (T*Bp, F) rows so the
    # hoisted layer-0 projection is a single MXU matmul. jnp.pad avoids the
    # zeros().at[].set double materialization.
    x_tm = jnp.pad(jnp.transpose(x, (1, 0, 2)).astype(mxu_dtype),
                   ((0, 0), (0, Bp - B), (0, 0)))
    x2d = x_tm.reshape(T * Bp, F)

    # BN row mask: 1/B on real rows, 0 on padding rows.
    mask = (jnp.arange(Bp) < B).astype(f32).reshape(Bp, 1) * (1.0 / B)

    inputs = [mask, x2d]
    for (wih_T, whh_T, b) in lstm_p:
        inputs += [cast(wih_T), cast(whh_T), b.astype(f32)]

    # FC layers: pad hidden dims to 128 lanes (zero weight rows/cols, zero
    # bias/gamma/beta pad lanes -> padded lanes stay exactly 0 through BN/ReLU).
    prev_pad = H
    for (w_T, b, g, be) in fc_p:
        din, dout = w_T.shape
        dout_pad = _round_up(max(dout, 128), 128)
        inputs += [
            jnp.pad(cast(w_T), ((0, prev_pad - din), (0, dout_pad - dout))),
            jnp.pad(b.astype(f32), ((0, 0), (0, dout_pad - dout))),
            jnp.pad(g.astype(f32), ((0, 0), (0, dout_pad - dout))),
            jnp.pad(be.astype(f32), ((0, 0), (0, dout_pad - dout))),
        ]
        prev_pad = dout_pad

    dlast = w_out_T.shape[0]
    inputs += [
        jnp.pad(cast(w_out_T), ((0, prev_pad - dlast), (0, Op - O))),
        jnp.pad(b_out.astype(f32), ((0, 0), (0, Op - O))),
    ]

    kernel = functools.partial(_lstm_regressor_kernel, len(lstm_p), len(fc_p), H)

    # Size the VMEM limit from the real footprint (+ pre_g0 + output) with 4x
    # headroom for compiler scratch / intermediates; cap at 48 MiB so it stays
    # safely inside v7x's 64 MiB physical VMEM per TensorCore.
    footprint = sum(int(a.size) * a.dtype.itemsize for a in inputs)
    footprint += Bp * Op * 4                 # output
    footprint += T * Bp * 4 * H * 4          # pre_g0 (f32)
    vmem_limit = int(min(48 * 1024 * 1024, max(4 * 1024 * 1024, 4 * footprint)))

    out = pl.pallas_call(
        kernel,
        out_shape=jax.ShapeDtypeStruct((Bp, Op), f32),
        in_specs=[pl.BlockSpec(memory_space=pltpu.MemorySpace.VMEM)] * len(inputs),
        out_specs=pl.BlockSpec(memory_space=pltpu.MemorySpace.VMEM),
        compiler_params=pltpu.CompilerParams(vmem_limit_bytes=vmem_limit),
    )(*inputs)
    return out[:B, :O]


# ----------------------------------------------------------------------------
# Deterministic parameter construction (synthetic, not a checkpoint load).
# ----------------------------------------------------------------------------
def init_params(key, in_features, hidden_size, num_layers, fc_hidden_dims, out_features):
    def nxt():
        nonlocal key
        key, sub = jax.random.split(key)
        return sub

    lstm_p = []
    for l in range(num_layers):
        fan_in = in_features if l == 0 else hidden_size
        wih_T = jax.random.normal(nxt(), (fan_in, 4 * hidden_size), jnp.float32) * 0.1
        whh_T = jax.random.normal(nxt(), (hidden_size, 4 * hidden_size), jnp.float32) * 0.1
        bias = jax.random.normal(nxt(), (1, 4 * hidden_size), jnp.float32) * 0.1  # bias_ih+bias_hh
        lstm_p.append((wih_T, whh_T, bias))

    fc_p = []
    prev = hidden_size
    for dim in fc_hidden_dims:
        w_T = jax.random.normal(nxt(), (prev, dim), jnp.float32) * 0.1
        b = jax.random.normal(nxt(), (1, dim), jnp.float32) * 0.1
        gamma = 1.0 + 0.05 * jax.random.normal(nxt(), (1, dim), jnp.float32)
        beta = 0.05 * jax.random.normal(nxt(), (1, dim), jnp.float32)
        fc_p.append((w_T, b, gamma, beta))
        prev = dim

    w_out_T = jax.random.normal(nxt(), (prev, out_features), jnp.float32) * 0.1
    b_out = jax.random.normal(nxt(), (1, out_features), jnp.float32) * 0.1
    return lstm_p, fc_p, (w_out_T, b_out)


# ----------------------------------------------------------------------------
# Pure-JAX reference (module semantics, same matmul operand precision policy
# as the kernel -- bf16 operands, f32 accumulation -- so the comparison is
# apples-to-apples).
# ----------------------------------------------------------------------------
def reference_forward(x, params, mxu_dtype=jnp.bfloat16):
    def mm(a, w):
        return jnp.dot(a.astype(mxu_dtype), w.astype(mxu_dtype),
                       preferred_element_type=jnp.float32)

    lstm_p, fc_p, (w_out_T, b_out) = params
    B, T, _ = x.shape
    H = lstm_p[0][1].shape[0]
    hs = [jnp.zeros((B, H), jnp.float32) for _ in lstm_p]
    cs = [jnp.zeros((B, H), jnp.float32) for _ in lstm_p]
    for t in range(T):
        inp = x[:, t, :]
        for l, (wih_T, whh_T, b) in enumerate(lstm_p):
            gates = mm(inp, wih_T) + mm(hs[l], whh_T) + b
            i_g = jax.nn.sigmoid(gates[:, 0 * H:1 * H])
            f_g = jax.nn.sigmoid(gates[:, 1 * H:2 * H])
            g_g = jnp.tanh(gates[:, 2 * H:3 * H])
            o_g = jax.nn.sigmoid(gates[:, 3 * H:4 * H])
            cs[l] = f_g * cs[l] + i_g * g_g
            hs[l] = o_g * jnp.tanh(cs[l])
            inp = hs[l]
    z = hs[-1]
    for (w_T, b, g, be) in fc_p:
        z = mm(z, w_T) + b
        mean = jnp.mean(z, axis=0, keepdims=True)
        var = jnp.mean((z - mean) ** 2, axis=0, keepdims=True)   # biased (BN train mode)
        z = g * (z - mean) * lax.rsqrt(var + 1e-5) + be
        z = jnp.maximum(z, 0.0)
    return mm(z, w_out_T) + b_out


if __name__ == "__main__":
    # Small shapes consistent with the module's forward.
    B, T = 2, 8
    in_features, hidden_size, num_layers = 8, 32, 2
    fc_hidden_dims = (32, 32)
    out_features = 4

    key = jax.random.PRNGKey(0)
    key, xk = jax.random.split(key)
    x = jax.random.normal(xk, (B, T, in_features), jnp.float32)

    params = init_params(key, in_features, hidden_size, num_layers,
                         fc_hidden_dims, out_features)

    out = lstm_regressor_forward(x, params)
    out = jax.block_until_ready(out)

    ref = reference_forward(x, params)
    assert out.shape == (B, out_features)
    assert bool(jnp.all(jnp.abs(out - ref) < 1e-2)), "kernel mismatch vs JAX reference"

    print("KERNEL_OK")
</pallas_src>

<mosaic_0001>
module attributes {stable_mosaic.version = 11 : i64} {
  func.func @_lstm_regressor_kernel(%arg0: memref<8x1xf32, #tpu.memory_space<vmem>>, %arg1: memref<64x8xbf16, #tpu.memory_space<vmem>>, %arg2: memref<8x128xbf16, #tpu.memory_space<vmem>>, %arg3: memref<32x128xbf16, #tpu.memory_space<vmem>>, %arg4: memref<1x128xf32, #tpu.memory_space<vmem>>, %arg5: memref<32x128xbf16, #tpu.memory_space<vmem>>, %arg6: memref<32x128xbf16, #tpu.memory_space<vmem>>, %arg7: memref<1x128xf32, #tpu.memory_space<vmem>>, %arg8: memref<32x128xbf16, #tpu.memory_space<vmem>>, %arg9: memref<1x128xf32, #tpu.memory_space<vmem>>, %arg10: memref<1x128xf32, #tpu.memory_space<vmem>>, %arg11: memref<1x128xf32, #tpu.memory_space<vmem>>, %arg12: memref<128x128xbf16, #tpu.memory_space<vmem>>, %arg13: memref<1x128xf32, #tpu.memory_space<vmem>>, %arg14: memref<1x128xf32, #tpu.memory_space<vmem>>, %arg15: memref<1x128xf32, #tpu.memory_space<vmem>>, %arg16: memref<128x128xbf16, #tpu.memory_space<vmem>>, %arg17: memref<1x128xf32, #tpu.memory_space<vmem>>, %arg18: memref<8x128xf32, #tpu.memory_space<vmem>>) attributes {dimension_semantics = [], scalar_prefetch = 0 : i64, scratch_operands = 0 : i64, tpu.core_type = #tpu.core_type<tc>} {
    %c0 = arith.constant 0 : index
    %c0_0 = arith.constant 0 : index
    %0 = vector.load %arg1[%c0, %c0_0] : memref<64x8xbf16, #tpu.memory_space<vmem>>, vector<64x8xbf16>
    %c0_1 = arith.constant 0 : index
    %c0_2 = arith.constant 0 : index
    %1 = vector.load %arg2[%c0_1, %c0_2] : memref<8x128xbf16, #tpu.memory_space<vmem>>, vector<8x128xbf16>
    %cst = arith.constant dense<0.000000e+00> : vector<64x128xf32>
    %2 = tpu.matmul %0, %1, %cst {dimension_numbers = #tpu.dot_dimension_numbers<[1], [0], [0], [1], [0, 0, 1, 1], [], []>} : vector<64x8xbf16>, vector<8x128xbf16>, vector<64x128xf32> -> vector<64x128xf32>
    %c0_3 = arith.constant 0 : index
    %c0_4 = arith.constant 0 : index
    %3 = vector.load %arg4[%c0_3, %c0_4] : memref<1x128xf32, #tpu.memory_space<vmem>>, vector<1x128xf32>
    %4 = vector.broadcast %3 : vector<1x128xf32> to vector<64x128xf32>
    %5 = arith.addf %2, %4 : vector<64x128xf32>
    %cst_5 = arith.constant 0.000000e+00 : f32
    %6 = vector.broadcast %cst_5 : f32 to vector<8x32xf32>
    %cst_6 = arith.constant 0.000000e+00 : f32
    %7 = vector.broadcast %cst_6 : f32 to vector<8x32xf32>
    %cst_7 = arith.constant 0.000000e+00 : f32
    %8 = vector.broadcast %cst_7 : f32 to vector<8x32xf32>
    %cst_8 = arith.constant 0.000000e+00 : f32
    %9 = vector.broadcast %cst_8 : f32 to vector<8x32xf32>
    %10 = vector.extract_strided_slice %5 {offsets = [0, 0], sizes = [8, 128], strides = [1, 1]} : vector<64x128xf32> to vector<8x128xf32>
    %11 = arith.truncf %6 : vector<8x32xf32> to vector<8x32xbf16>
    %c0_9 = arith.constant 0 : index
    %c0_10 = arith.constant 0 : index
    %12 = vector.load %arg3[%c0_9, %c0_10] : memref<32x128xbf16, #tpu.memory_space<vmem>>, vector<32x128xbf16>
    %cst_11 = arith.constant dense<0.000000e+00> : vector<8x128xf32>
    %13 = tpu.matmul %11, %12, %cst_11 {dimension_numbers = #tpu.dot_dimension_numbers<[1], [0], [0], [1], [0, 0, 1, 1], [], []>} : vector<8x32xbf16>, vector<32x128xbf16>, vector<8x128xf32> -> vector<8x128xf32>
    %14 = arith.addf %10, %13 : vector<8x128xf32>
    %15 = arith.negf %14 : vector<8x128xf32>
    %16 = math.exp %15 : vector<8x128xf32>
    %cst_12 = arith.constant 1.000000e+00 : f32
    %17 = vector.broadcast %cst_12 : f32 to vector<8x128xf32>
    %18 = arith.addf %17, %16 : vector<8x128xf32>
    %19 = arith.divf %17, %18 : vector<8x128xf32>
    %20 = vector.extract_strided_slice %19 {offsets = [0, 0], sizes = [8, 32], strides = [1, 1]} : vector<8x128xf32> to vector<8x32xf32>
    %21 = vector.extract_strided_slice %19 {offsets = [0, 32], sizes = [8, 32], strides = [1, 1]} : vector<8x128xf32> to vector<8x32xf32>
    %22 = vector.extract_strided_slice %19 {offsets = [0, 96], sizes = [8, 32], strides = [1, 1]} : vector<8x128xf32> to vector<8x32xf32>
    %23 = vector.extract_strided_slice %14 {offsets = [0, 64], sizes = [8, 32], strides = [1, 1]} : vector<8x128xf32> to vector<8x32xf32>
    %24 = math.tanh %23 : vector<8x32xf32>
    %25 = arith.mulf %21, %8 : vector<8x32xf32>
    %26 = arith.mulf %20, %24 : vector<8x32xf32>
    %27 = arith.addf %25, %26 : vector<8x32xf32>
    %28 = math.tanh %27 : vector<8x32xf32>
    %29 = arith.mulf %22, %28 : vector<8x32xf32>
    %30 = arith.truncf %29 : vector<8x32xf32> to vector<8x32xbf16>
    %c0_13 = arith.constant 0 : index
    %c0_14 = arith.constant 0 : index
    %31 = vector.load %arg5[%c0_13, %c0_14] : memref<32x128xbf16, #tpu.memory_space<vmem>>, vector<32x128xbf16>
    %cst_15 = arith.constant dense<0.000000e+00> : vector<8x128xf32>
    %32 = tpu.matmul %30, %31, %cst_15 {dimension_numbers = #tpu.dot_dimension_numbers<[1], [0], [0], [1], [0, 0, 1, 1], [], []>} : vector<8x32xbf16>, vector<32x128xbf16>, vector<8x128xf32> -> vector<8x128xf32>
    %33 = arith.truncf %7 : vector<8x32xf32> to vector<8x32xbf16>
    %c0_16 = arith.constant 0 : index
    %c0_17 = arith.constant 0 : index
    %34 = vector.load %arg6[%c0_16, %c0_17] : memref<32x128xbf16, #tpu.memory_space<vmem>>, vector<32x128xbf16>
    %cst_18 = arith.constant dense<0.000000e+00> : vector<8x128xf32>
    %35 = tpu.matmul %33, %34, %cst_18 {dimension_numbers = #tpu.dot_dimension_numbers<[1], [0], [0], [1], [0, 0, 1, 1], [], []>} : vector<8x32xbf16>, vector<32x128xbf16>, vector<8x128xf32> -> vector<8x128xf32>
    %36 = arith.addf %32, %35 : vector<8x128xf32>
    %c0_19 = arith.constant 0 : index
    %c0_20 = arith.constant 0 : index
    %37 = vector.load %arg7[%c0_19, %c0_20] : memref<1x128xf32, #tpu.memory_space<vmem>>, vector<1x128xf32>
    %38 = vector.broadcast %37 : vector<1x128xf32> to vector<8x128xf32>
    %39 = arith.addf %36, %38 : vector<8x128xf32>
    %40 = arith.negf %39 : vector<8x128xf32>
    %41 = math.exp %40 : vector<8x128xf32>
    %cst_21 = arith.constant 1.000000e+00 : f32
    %42 = vector.broadcast %cst_21 : f32 to vector<8x128xf32>
    %43 = arith.addf %42, %41 : vector<8x128xf32>
    %44 = arith.divf %42, %43 : vector<8x128xf32>
    %45 = vector.extract_strided_slice %44 {offsets = [0, 0], sizes = [8, 32], strides = [1, 1]} : vector<8x128xf32> to vector<8x32xf32>
    %46 = vector.extract_strided_slice %44 {offsets = [0, 32], sizes = [8, 32], strides = [1, 1]} : vector<8x128xf32> to vector<8x32xf32>
    %47 = vector.extract_strided_slice %44 {offsets = [0, 96], sizes = [8, 32], strides = [1, 1]} : vector<8x128xf32> to vector<8x32xf32>
    %48 = vector.extract_strided_slice %39 {offsets = [0, 64], sizes = [8, 32], strides = [1, 1]} : vector<8x128xf32> to vector<8x32xf32>
    %49 = math.tanh %48 : vector<8x32xf32>
    %50 = arith.mulf %46, %9 : vector<8x32xf32>
    %51 = arith.mulf %45, %49 : vector<8x32xf32>
    %52 = arith.addf %50, %51 : vector<8x32xf32>
    %53 = math.tanh %52 : vector<8x32xf32>
    %54 = arith.mulf %47, %53 : vector<8x32xf32>
    %55 = vector.extract_strided_slice %5 {offsets = [8, 0], sizes = [8, 128], strides = [1, 1]} : vector<64x128xf32> to vector<8x128xf32>
    %56 = arith.truncf %29 : vector<8x32xf32> to vector<8x32xbf16>
    %c0_22 = arith.constant 0 : index
    %c0_23 = arith.constant 0 : index
    %57 = vector.load %arg3[%c0_22, %c0_23] : memref<32x128xbf16, #tpu.memory_space<vmem>>, vector<32x128xbf16>
    %cst_24 = arith.constant dense<0.000000e+00> : vector<8x128xf32>
    %58 = tpu.matmul %56, %57, %cst_24 {dimension_numbers = #tpu.dot_dimension_numbers<[1], [0], [0], [1], [0, 0, 1, 1], [], []>} : vector<8x32xbf16>, vector<32x128xbf16>, vector<8x128xf32> -> vector<8x128xf32>
    %59 = arith.addf %55, %58 : vector<8x128xf32>
    %60 = arith.negf %59 : vector<8x128xf32>
    %61 = math.exp %60 : vector<8x128xf32>
    %cst_25 = arith.constant 1.000000e+00 : f32
    %62 = vector.broadcast %cst_25 : f32 to vector<8x128xf32>
    %63 = arith.addf %62, %61 : vector<8x128xf32>
    %64 = arith.divf %62, %63 : vector<8x128xf32>
    %65 = vector.extract_strided_slice %64 {offsets = [0, 0], sizes = [8, 32], strides = [1, 1]} : vector<8x128xf32> to vector<8x32xf32>
    %66 = vector.extract_strided_slice %64 {offsets = [0, 32], sizes = [8, 32], strides = [1, 1]} : vector<8x128xf32> to vector<8x32xf32>
    %67 = vector.extract_strided_slice %64 {offsets = [0, 96], sizes = [8, 32], strides = [1, 1]} : vector<8x128xf32> to vector<8x32xf32>
    %68 = vector.extract_strided_slice %59 {offsets = [0, 64], sizes = [8, 32], strides = [1, 1]} : vector<8x128xf32> to vector<8x32xf32>
    %69 = math.tanh %68 : vector<8x32xf32>
    %70 = arith.mulf %66, %27 : vector<8x32xf32>
    %71 = arith.mulf %65, %69 : vector<8x32xf32>
    %72 = arith.addf %70, %71 : vector<8x32xf32>
    %73 = math.tanh %72 : vector<8x32xf32>
    %74 = arith.mulf %67, %73 : vector<8x32xf32>
    %75 = arith.truncf %74 : vector<8x32xf32> to vector<8x32xbf16>
    %c0_26 = arith.constant 0 : index
    %c0_27 = arith.constant 0 : index
    %76 = vector.load %arg5[%c0_26, %c0_27] : memref<32x128xbf16, #tpu.memory_space<vmem>>, vector<32x128xbf16>
    %cst_28 = arith.constant dense<0.000000e+00> : vector<8x128xf32>
    %77 = tpu.matmul %75, %76, %cst_28 {dimension_numbers = #tpu.dot_dimension_numbers<[1], [0], [0], [1], [0, 0, 1, 1], [], []>} : vector<8x32xbf16>, vector<32x128xbf16>, vector<8x128xf32> -> vector<8x128xf32>
    %78 = arith.truncf %54 : vector<8x32xf32> to vector<8x32xbf16>
    %c0_29 = arith.constant 0 : index
    %c0_30 = arith.constant 0 : index
    %79 = vector.load %arg6[%c0_29, %c0_30] : memref<32x128xbf16, #tpu.memory_space<vmem>>, vector<32x128xbf16>
    %cst_31 = arith.constant dense<0.000000e+00> : vector<8x128xf32>
    %80 = tpu.matmul %78, %79, %cst_31 {dimension_numbers = #tpu.dot_dimension_numbers<[1], [0], [0], [1], [0, 0, 1, 1], [], []>} : vector<8x32xbf16>, vector<32x128xbf16>, vector<8x128xf32> -> vector<8x128xf32>
    %81 = arith.addf %77, %80 : vector<8x128xf32>
    %c0_32 = arith.constant 0 : index
    %c0_33 = arith.constant 0 : index
    %82 = vector.load %arg7[%c0_32, %c0_33] : memref<1x128xf32, #tpu.memory_space<vmem>>, vector<1x128xf32>
    %83 = vector.broadcast %82 : vector<1x128xf32> to vector<8x128xf32>
    %84 = arith.addf %81, %83 : vector<8x128xf32>
    %85 = arith.negf %84 : vector<8x128xf32>
    %86 = math.exp %85 : vector<8x128xf32>
    %cst_34 = arith.constant 1.000000e+00 : f32
    %87 = vector.broadcast %cst_34 : f32 to vector<8x128xf32>
    %88 = arith.addf %87, %86 : vector<8x128xf32>
    %89 = arith.divf %87, %88 : vector<8x128xf32>
    %90 = vector.extract_strided_slice %89 {offsets = [0, 0], sizes = [8, 32], strides = [1, 1]} : vector<8x128xf32> to vector<8x32xf32>
    %91 = vector.extract_strided_slice %89 {offsets = [0, 32], sizes = [8, 32], strides = [1, 1]} : vector<8x128xf32> to vector<8x32xf32>
    %92 = vector.extract_strided_slice %89 {offsets = [0, 96], sizes = [8, 32], strides = [1, 1]} : vector<8x128xf32> to vector<8x32xf32>
    %93 = vector.extract_strided_slice %84 {offsets = [0, 64], sizes = [8, 32], strides = [1, 1]} : vector<8x128xf32> to vector<8x32xf32>
    %94 = math.tanh %93 : vector<8x32xf32>
    %95 = arith.mulf %91, %52 : vector<8x32xf32>
    %96 = arith.mulf %90, %94 : vector<8x32xf32>
    %97 = arith.addf %95, %96 : vector<8x32xf32>
    %98 = math.tanh %97 : vector<8x32xf32>
    %99 = arith.mulf %92, %98 : vector<8x32xf32>
    %100 = vector.extract_strided_slice %5 {offsets = [16, 0], sizes = [8, 128], strides = [1, 1]} : vector<64x128xf32> to vector<8x128xf32>
    %101 = arith.truncf %74 : vector<8x32xf32> to vector<8x32xbf16>
    %c0_35 = arith.constant 0 : index
    %c0_36 = arith.constant 0 : index
    %102 = vector.load %arg3[%c0_35, %c0_36] : memref<32x128xbf16, #tpu.memory_space<vmem>>, vector<32x128xbf16>
    %cst_37 = arith.constant dense<0.000000e+00> : vector<8x128xf32>
    %103 = tpu.matmul %101, %102, %cst_37 {dimension_numbers = #tpu.dot_dimension_numbers<[1], [0], [0], [1], [0, 0, 1, 1], [], []>} : vector<8x32xbf16>, vector<32x128xbf16>, vector<8x128xf32> -> vector<8x128xf32>
    %104 = arith.addf %100, %103 : vector<8x128xf32>
    %105 = arith.negf %104 : vector<8x128xf32>
    %106 = math.exp %105 : vector<8x128xf32>
    %cst_38 = arith.constant 1.000000e+00 : f32
    %107 = vector.broadcast %cst_38 : f32 to vector<8x128xf32>
    %108 = arith.addf %107, %106 : vector<8x128xf32>
    %109 = arith.divf %107, %108 : vector<8x128xf32>
    %110 = vector.extract_strided_slice %109 {offsets = [0, 0], sizes = [8, 32], strides = [1, 1]} : vector<8x128xf32> to vector<8x32xf32>
    %111 = vector.extract_strided_slice %109 {offsets = [0, 32], sizes = [8, 32], strides = [1, 1]} : vector<8x128xf32> to vector<8x32xf32>
    %112 = vector.extract_strided_slice %109 {offsets = [0, 96], sizes = [8, 32], strides = [1, 1]} : vector<8x128xf32> to vector<8x32xf32>
    %113 = vector.extract_strided_slice %104 {offsets = [0, 64], sizes = [8, 32], strides = [1, 1]} : vector<8x128xf32> to vector<8x32xf32>
    %114 = math.tanh %113 : vector<8x32xf32>
    %115 = arith.mulf %111, %72 : vector<8x32xf32>
    %116 = arith.mulf %110, %114 : vector<8x32xf32>
    %117 = arith.addf %115, %116 : vector<8x32xf32>
    %118 = math.tanh %117 : vector<8x32xf32>
    %119 = arith.mulf %112, %118 : vector<8x32xf32>
    %120 = arith.truncf %119 : vector<8x32xf32> to vector<8x32xbf16>
    %c0_39 = arith.constant 0 : index
    %c0_40 = arith.constant 0 : index
    %121 = vector.load %arg5[%c0_39, %c0_40] : memref<32x128xbf16, #tpu.memory_space<vmem>>, vector<32x128xbf16>
    %cst_41 = arith.constant dense<0.000000e+00> : vector<8x128xf32>
    %122 = tpu.matmul %120, %121, %cst_41 {dimension_numbers = #tpu.dot_dimension_numbers<[1], [0], [0], [1], [0, 0, 1, 1], [], []>} : vector<8x32xbf16>, vector<32x128xbf16>, vector<8x128xf32> -> vector<8x128xf32>
    %123 = arith.truncf %99 : vector<8x32xf32> to vector<8x32xbf16>
    %c0_42 = arith.constant 0 : index
    %c0_43 = arith.constant 0 : index
    %124 = vector.load %arg6[%c0_42, %c0_43] : memref<32x128xbf16, #tpu.memory_space<vmem>>, vector<32x128xbf16>
    %cst_44 = arith.constant dense<0.000000e+00> : vector<8x128xf32>
    %125 = tpu.matmul %123, %124, %cst_44 {dimension_numbers = #tpu.dot_dimension_numbers<[1], [0], [0], [1], [0, 0, 1, 1], [], []>} : vector<8x32xbf16>, vector<32x128xbf16>, vector<8x128xf32> -> vector<8x128xf32>
    %126 = arith.addf %122, %125 : vector<8x128xf32>
    %c0_45 = arith.constant 0 : index
    %c0_46 = arith.constant 0 : index
    %127 = vector.load %arg7[%c0_45, %c0_46] : memref<1x128xf32, #tpu.memory_space<vmem>>, vector<1x128xf32>
    %128 = vector.broadcast %127 : vector<1x128xf32> to vector<8x128xf32>
    %129 = arith.addf %126, %128 : vector<8x128xf32>
    %130 = arith.negf %129 : vector<8x128xf32>
    %131 = math.exp %130 : vector<8x128xf32>
    %cst_47 = arith.constant 1.000000e+00 : f32
    %132 = vector.broadcast %cst_47 : f32 to vector<8x128xf32>
    %133 = arith.addf %132, %131 : vector<8x128xf32>
    %134 = arith.divf %132, %133 : vector<8x128xf32>
    %135 = vector.extract_strided_slice %134 {offsets = [0, 0], sizes = [8, 32], strides = [1, 1]} : vector<8x128xf32> to vector<8x32xf32>
    %136 = vector.extract_strided_slice %134 {offsets = [0, 32], sizes = [8, 32], strides = [1, 1]} : vector<8x128xf32> to vector<8x32xf32>
    %137 = vector.extract_strided_slice %134 {offsets = [0, 96], sizes = [8, 32], strides = [1, 1]} : vector<8x128xf32> to vector<8x32xf32>
    %138 = vector.extract_strided_slice %129 {offsets = [0, 64], sizes = [8, 32], strides = [1, 1]} : vector<8x128xf32> to vector<8x32xf32>
    %139 = math.tanh %138 : vector<8x32xf32>
    %140 = arith.mulf %136, %97 : vector<8x32xf32>
    %141 = arith.mulf %135, %139 : vector<8x32xf32>
    %142 = arith.addf %140, %141 : vector<8x32xf32>
    %143 = math.tanh %142 : vector<8x32xf32>
    %144 = arith.mulf %137, %143 : vector<8x32xf32>
    %145 = vector.extract_strided_slice %5 {offsets = [24, 0], sizes = [8, 128], strides = [1, 1]} : vector<64x128xf32> to vector<8x128xf32>
    %146 = arith.truncf %119 : vector<8x32xf32> to vector<8x32xbf16>
    %c0_48 = arith.constant 0 : index
    %c0_49 = arith.constant 0 : index
    %147 = vector.load %arg3[%c0_48, %c0_49] : memref<32x128xbf16, #tpu.memory_space<vmem>>, vector<32x128xbf16>
    %cst_50 = arith.constant dense<0.000000e+00> : vector<8x128xf32>
    %148 = tpu.matmul %146, %147, %cst_50 {dimension_numbers = #tpu.dot_dimension_numbers<[1], [0], [0], [1], [0, 0, 1, 1], [], []>} : vector<8x32xbf16>, vector<32x128xbf16>, vector<8x128xf32> -> vector<8x128xf32>
    %149 = arith.addf %145, %148 : vector<8x128xf32>
    %150 = arith.negf %149 : vector<8x128xf32>
    %151 = math.exp %150 : vector<8x128xf32>
    %cst_51 = arith.constant 1.000000e+00 : f32
    %152 = vector.broadcast %cst_51 : f32 to vector<8x128xf32>
    %153 = arith.addf %152, %151 : vector<8x128xf32>
    %154 = arith.divf %152, %153 : vector<8x128xf32>
    %155 = vector.extract_strided_slice %154 {offsets = [0, 0], sizes = [8, 32], strides = [1, 1]} : vector<8x128xf32> to vector<8x32xf32>
    %156 = vector.extract_strided_slice %154 {offsets = [0, 32], sizes = [8, 32], strides = [1, 1]} : vector<8x128xf32> to vector<8x32xf32>
    %157 = vector.extract_strided_slice %154 {offsets = [0, 96], sizes = [8, 32], strides = [1, 1]} : vector<8x128xf32> to vector<8x32xf32>
    %158 = vector.extract_strided_slice %149 {offsets = [0, 64], sizes = [8, 32], strides = [1, 1]} : vector<8x128xf32> to vector<8x32xf32>
    %159 = math.tanh %158 : vector<8x32xf32>
    %160 = arith.mulf %156, %117 : vector<8x32xf32>
    %161 = arith.mulf %155, %159 : vector<8x32xf32>
    %162 = arith.addf %160, %161 : vector<8x32xf32>
    %163 = math.tanh %162 : vector<8x32xf32>
    %164 = arith.mulf %157, %163 : vector<8x32xf32>
    %165 = arith.truncf %164 : vector<8x32xf32> to vector<8x32xbf16>
    %c0_52 = arith.constant 0 : index
    %c0_53 = arith.constant 0 : index
    %166 = vector.load %arg5[%c0_52, %c0_53] : memref<32x128xbf16, #tpu.memory_space<vmem>>, vector<32x128xbf16>
    %cst_54 = arith.constant dense<0.000000e+00> : vector<8x128xf32>
    %167 = tpu.matmul %165, %166, %cst_54 {dimension_numbers = #tpu.dot_dimension_numbers<[1], [0], [0], [1], [0, 0, 1, 1], [], []>} : vector<8x32xbf16>, vector<32x128xbf16>, vector<8x128xf32> -> vector<8x128xf32>
    %168 = arith.truncf %144 : vector<8x32xf32> to vector<8x32xbf16>
    %c0_55 = arith.constant 0 : index
    %c0_56 = arith.constant 0 : index
    %169 = vector.load %arg6[%c0_55, %c0_56] : memref<32x128xbf16, #tpu.memory_space<vmem>>, vector<32x128xbf16>
    %cst_57 = arith.constant dense<0.000000e+00> : vector<8x128xf32>
    %170 = tpu.matmul %168, %169, %cst_57 {dimension_numbers = #tpu.dot_dimension_numbers<[1], [0], [0], [1], [0, 0, 1, 1], [], []>} : vector<8x32xbf16>, vector<32x128xbf16>, vector<8x128xf32> -> vector<8x128xf32>
    %171 = arith.addf %167, %170 : vector<8x128xf32>
    %c0_58 = arith.constant 0 : index
    %c0_59 = arith.constant 0 : index
    %172 = vector.load %arg7[%c0_58, %c0_59] : memref<1x128xf32, #tpu.memory_space<vmem>>, vector<1x128xf32>
    %173 = vector.broadcast %172 : vector<1x128xf32> to vector<8x128xf32>
    %174 = arith.addf %171, %173 : vector<8x128xf32>
    %175 = arith.negf %174 : vector<8x128xf32>
    %176 = math.exp %175 : vector<8x128xf32>
    %cst_60 = arith.constant 1.000000e+00 : f32
    %177 = vector.broadcast %cst_60 : f32 to vector<8x128xf32>
    %178 = arith.addf %177, %176 : vector<8x128xf32>
    %179 = arith.divf %177, %178 : vector<8x128xf32>
    %180 = vector.extract_strided_slice %179 {offsets = [0, 0], sizes = [8, 32], strides = [1, 1]} : vector<8x128xf32> to vector<8x32xf32>
    %181 = vector.extract_strided_slice %179 {offsets = [0, 32], sizes = [8, 32], strides = [1, 1]} : vector<8x128xf32> to vector<8x32xf32>
    %182 = vector.extract_strided_slice %179 {offsets = [0, 96], sizes = [8, 32], strides = [1, 1]} : vector<8x128xf32> to vector<8x32xf32>
    %183 = vector.extract_strided_slice %174 {offsets = [0, 64], sizes = [8, 32], strides = [1, 1]} : vector<8x128xf32> to vector<8x32xf32>
    %184 = math.tanh %183 : vector<8x32xf32>
    %185 = arith.mulf %181, %142 : vector<8x32xf32>
    %186 = arith.mulf %180, %184 : vector<8x32xf32>
    %187 = arith.addf %185, %186 : vector<8x32xf32>
    %188 = math.tanh %187 : vector<8x32xf32>
    %189 = arith.mulf %182, %188 : vector<8x32xf32>
    %190 = vector.extract_strided_slice %5 {offsets = [32, 0], sizes = [8, 128], strides = [1, 1]} : vector<64x128xf32> to vector<8x128xf32>
    %191 = arith.truncf %164 : vector<8x32xf32> to vector<8x32xbf16>
    %c0_61 = arith.constant 0 : index
    %c0_62 = arith.constant 0 : index
    %192 = vector.load %arg3[%c0_61, %c0_62] : memref<32x128xbf16, #tpu.memory_space<vmem>>, vector<32x128xbf16>
    %cst_63 = arith.constant dense<0.000000e+00> : vector<8x128xf32>
    %193 = tpu.matmul %191, %192, %cst_63 {dimension_numbers = #tpu.dot_dimension_numbers<[1], [0], [0], [1], [0, 0, 1, 1], [], []>} : vector<8x32xbf16>, vector<32x128xbf16>, vector<8x128xf32> -> vector<8x128xf32>
    %194 = arith.addf %190, %193 : vector<8x128xf32>
    %195 = arith.negf %194 : vector<8x128xf32>
    %196 = math.exp %195 : vector<8x128xf32>
    %cst_64 = arith.constant 1.000000e+00 : f32
    %197 = vector.broadcast %cst_64 : f32 to vector<8x128xf32>
    %198 = arith.addf %197, %196 : vector<8x128xf32>
    %199 = arith.divf %197, %198 : vector<8x128xf32>
    %200 = vector.extract_strided_slice %199 {offsets = [0, 0], sizes = [8, 32], strides = [1, 1]} : vector<8x128xf32> to vector<8x32xf32>
    %201 = vector.extract_strided_slice %199 {offsets = [0, 32], sizes = [8, 32], strides = [1, 1]} : vector<8x128xf32> to vector<8x32xf32>
    %202 = vector.extract_strided_slice %199 {offsets = [0, 96], sizes = [8, 32], strides = [1, 1]} : vector<8x128xf32> to vector<8x32xf32>
    %203 = vector.extract_strided_slice %194 {offsets = [0, 64], sizes = [8, 32], strides = [1, 1]} : vector<8x128xf32> to vector<8x32xf32>
    %204 = math.tanh %203 : vector<8x32xf32>
    %205 = arith.mulf %201, %162 : vector<8x32xf32>
    %206 = arith.mulf %200, %204 : vector<8x32xf32>
    %207 = arith.addf %205, %206 : vector<8x32xf32>
    %208 = math.tanh %207 : vector<8x32xf32>
    %209 = arith.mulf %202, %208 : vector<8x32xf32>
    %210 = arith.truncf %209 : vector<8x32xf32> to vector<8x32xbf16>
    %c0_65 = arith.constant 0 : index
    %c0_66 = arith.constant 0 : index
    %211 = vector.load %arg5[%c0_65, %c0_66] : memref<32x128xbf16, #tpu.memory_space<vmem>>, vector<32x128xbf16>
    %cst_67 = arith.constant dense<0.000000e+00> : vector<8x128xf32>
    %212 = tpu.matmul %210, %211, %cst_67 {dimension_numbers = #tpu.dot_dimension_numbers<[1], [0], [0], [1], [0, 0, 1, 1], [], []>} : vector<8x32xbf16>, vector<32x128xbf16>, vector<8x128xf32> -> vector<8x128xf32>
    %213 = arith.truncf %189 : vector<8x32xf32> to vector<8x32xbf16>
    %c0_68 = arith.constant 0 : index
    %c0_69 = arith.constant 0 : index
    %214 = vector.load %arg6[%c0_68, %c0_69] : memref<32x128xbf16, #tpu.memory_space<vmem>>, vector<32x128xbf16>
    %cst_70 = arith.constant dense<0.000000e+00> : vector<8x128xf32>
    %215 = tpu.matmul %213, %214, %cst_70 {dimension_numbers = #tpu.dot_dimension_numbers<[1], [0], [0], [1], [0, 0, 1, 1], [], []>} : vector<8x32xbf16>, vector<32x128xbf16>, vector<8x128xf32> -> vector<8x128xf32>
    %216 = arith.addf %212, %215 : vector<8x128xf32>
    %c0_71 = arith.constant 0 : index
    %c0_72 = arith.constant 0 : index
    %217 = vector.load %arg7[%c0_71, %c0_72] : memref<1x128xf32, #tpu.memory_space<vmem>>, vector<1x128xf32>
    %218 = vector.broadcast %217 : vector<1x128xf32> to vector<8x128xf32>
    %219 = arith.addf %216, %218 : vector<8x128xf32>
    %220 = arith.negf %219 : vector<8x128xf32>
    %221 = math.exp %220 : vector<8x128xf32>
    %cst_73 = arith.constant 1.000000e+00 : f32
    %222 = vector.broadcast %cst_73 : f32 to vector<8x128xf32>
    %223 = arith.addf %222, %221 : vector<8x128xf32>
    %224 = arith.divf %222, %223 : vector<8x128xf32>
    %225 = vector.extract_strided_slice %224 {offsets = [0, 0], sizes = [8, 32], strides = [1, 1]} : vector<8x128xf32> to vector<8x32xf32>
    %226 = vector.extract_strided_slice %224 {offsets = [0, 32], sizes = [8, 32], strides = [1, 1]} : vector<8x128xf32> to vector<8x32xf32>
    %227 = vector.extract_strided_slice %224 {offsets = [0, 96], sizes = [8, 32], strides = [1, 1]} : vector<8x128xf32> to vector<8x32xf32>
    %228 = vector.extract_strided_slice %219 {offsets = [0, 64], sizes = [8, 32], strides = [1, 1]} : vector<8x128xf32> to vector<8x32xf32>
    %229 = math.tanh %228 : vector<8x32xf32>
    %230 = arith.mulf %226, %187 : vector<8x32xf32>
    %231 = arith.mulf %225, %229 : vector<8x32xf32>
    %232 = arith.addf %230, %231 : vector<8x32xf32>
    %233 = math.tanh %232 : vector<8x32xf32>
    %234 = arith.mulf %227, %233 : vector<8x32xf32>
    %235 = vector.extract_strided_slice %5 {offsets = [40, 0], sizes = [8, 128], strides = [1, 1]} : vector<64x128xf32> to vector<8x128xf32>
    %236 = arith.truncf %209 : vector<8x32xf32> to vector<8x32xbf16>
    %c0_74 = arith.constant 0 : index
    %c0_75 = arith.constant 0 : index
    %237 = vector.load %arg3[%c0_74, %c0_75] : memref<32x128xbf16, #tpu.memory_space<vmem>>, vector<32x128xbf16>
    %cst_76 = arith.constant dense<0.000000e+00> : vector<8x128xf32>
    %238 = tpu.matmul %236, %237, %cst_76 {dimension_numbers = #tpu.dot_dimension_numbers<[1], [0], [0], [1], [0, 0, 1, 1], [], []>} : vector<8x32xbf16>, vector<32x128xbf16>, vector<8x128xf32> -> vector<8x128xf32>
    %239 = arith.addf %235, %238 : vector<8x128xf32>
    %240 = arith.negf %239 : vector<8x128xf32>
    %241 = math.exp %240 : vector<8x128xf32>
    %cst_77 = arith.constant 1.000000e+00 : f32
    %242 = vector.broadcast %cst_77 : f32 to vector<8x128xf32>
    %243 = arith.addf %242, %241 : vector<8x128xf32>
    %244 = arith.divf %242, %243 : vector<8x128xf32>
    %245 = vector.extract_strided_slice %244 {offsets = [0, 0], sizes = [8, 32], strides = [1, 1]} : vector<8x128xf32> to vector<8x32xf32>
    %246 = vector.extract_strided_slice %244 {offsets = [0, 32], sizes = [8, 32], strides = [1, 1]} : vector<8x128xf32> to vector<8x32xf32>
    %247 = vector.extract_strided_slice %244 {offsets = [0, 96], sizes = [8, 32], strides = [1, 1]} : vector<8x128xf32> to vector<8x32xf32>
    %248 = vector.extract_strided_slice %239 {offsets = [0, 64], sizes = [8, 32], strides = [1, 1]} : vector<8x128xf32> to vector<8x32xf32>
    %249 = math.tanh %248 : vector<8x32xf32>
    %250 = arith.mulf %246, %207 : vector<8x32xf32>
    %251 = arith.mulf %245, %249 : vector<8x32xf32>
    %252 = arith.addf %250, %251 : vector<8x32xf32>
    %253 = math.tanh %252 : vector<8x32xf32>
    %254 = arith.mulf %247, %253 : vector<8x32xf32>
    %255 = arith.truncf %254 : vector<8x32xf32> to vector<8x32xbf16>
    %c0_78 = arith.constant 0 : index
    %c0_79 = arith.constant 0 : index
    %256 = vector.load %arg5[%c0_78, %c0_79] : memref<32x128xbf16, #tpu.memory_space<vmem>>, vector<32x128xbf16>
    %cst_80 = arith.constant dense<0.000000e+00> : vector<8x128xf32>
    %257 = tpu.matmul %255, %256, %cst_80 {dimension_numbers = #tpu.dot_dimension_numbers<[1], [0], [0], [1], [0, 0, 1, 1], [], []>} : vector<8x32xbf16>, vector<32x128xbf16>, vector<8x128xf32> -> vector<8x128xf32>
    %258 = arith.truncf %234 : vector<8x32xf32> to vector<8x32xbf16>
    %c0_81 = arith.constant 0 : index
    %c0_82 = arith.constant 0 : index
    %259 = vector.load %arg6[%c0_81, %c0_82] : memref<32x128xbf16, #tpu.memory_space<vmem>>, vector<32x128xbf16>
    %cst_83 = arith.constant dense<0.000000e+00> : vector<8x128xf32>
    %260 = tpu.matmul %258, %259, %cst_83 {dimension_numbers = #tpu.dot_dimension_numbers<[1], [0], [0], [1], [0, 0, 1, 1], [], []>} : vector<8x32xbf16>, vector<32x128xbf16>, vector<8x128xf32> -> vector<8x128xf32>
    %261 = arith.addf %257, %260 : vector<8x128xf32>
    %c0_84 = arith.constant 0 : index
    %c0_85 = arith.constant 0 : index
    %262 = vector.load %arg7[%c0_84, %c0_85] : memref<1x128xf32, #tpu.memory_space<vmem>>, vector<1x128xf32>
    %263 = vector.broadcast %262 : vector<1x128xf32> to vector<8x128xf32>
    %264 = arith.addf %261, %263 : vector<8x128xf32>
    %265 = arith.negf %264 : vector<8x128xf32>
    %266 = math.exp %265 : vector<8x128xf32>
    %cst_86 = arith.constant 1.000000e+00 : f32
    %267 = vector.broadcast %cst_86 : f32 to vector<8x128xf32>
    %268 = arith.addf %267, %266 : vector<8x128xf32>
    %269 = arith.divf %267, %268 : vector<8x128xf32>
    %270 = vector.extract_strided_slice %269 {offsets = [0, 0], sizes = [8, 32], strides = [1, 1]} : vector<8x128xf32> to vector<8x32xf32>
    %271 = vector.extract_strided_slice %269 {offsets = [0, 32], sizes = [8, 32], strides = [1, 1]} : vector<8x128xf32> to vector<8x32xf32>
    %272 = vector.extract_strided_slice %269 {offsets = [0, 96], sizes = [8, 32], strides = [1, 1]} : vector<8x128xf32> to vector<8x32xf32>
    %273 = vector.extract_strided_slice %264 {offsets = [0, 64], sizes = [8, 32], strides = [1, 1]} : vector<8x128xf32> to vector<8x32xf32>
    %274 = math.tanh %273 : vector<8x32xf32>
    %275 = arith.mulf %271, %232 : vector<8x32xf32>
    %276 = arith.mulf %270, %274 : vector<8x32xf32>
    %277 = arith.addf %275, %276 : vector<8x32xf32>
    %278 = math.tanh %277 : vector<8x32xf32>
    %279 = arith.mulf %272, %278 : vector<8x32xf32>
    %280 = vector.extract_strided_slice %5 {offsets = [48, 0], sizes = [8, 128], strides = [1, 1]} : vector<64x128xf32> to vector<8x128xf32>
    %281 = arith.truncf %254 : vector<8x32xf32> to vector<8x32xbf16>
    %c0_87 = arith.constant 0 : index
    %c0_88 = arith.constant 0 : index
    %282 = vector.load %arg3[%c0_87, %c0_88] : memref<32x128xbf16, #tpu.memory_space<vmem>>, vector<32x128xbf16>
    %cst_89 = arith.constant dense<0.000000e+00> : vector<8x128xf32>
    %283 = tpu.matmul %281, %282, %cst_89 {dimension_numbers = #tpu.dot_dimension_numbers<[1], [0], [0], [1], [0, 0, 1, 1], [], []>} : vector<8x32xbf16>, vector<32x128xbf16>, vector<8x128xf32> -> vector<8x128xf32>
    %284 = arith.addf %280, %283 : vector<8x128xf32>
    %285 = arith.negf %284 : vector<8x128xf32>
    %286 = math.exp %285 : vector<8x128xf32>
    %cst_90 = arith.constant 1.000000e+00 : f32
    %287 = vector.broadcast %cst_90 : f32 to vector<8x128xf32>
    %288 = arith.addf %287, %286 : vector<8x128xf32>
    %289 = arith.divf %287, %288 : vector<8x128xf32>
    %290 = vector.extract_strided_slice %289 {offsets = [0, 0], sizes = [8, 32], strides = [1, 1]} : vector<8x128xf32> to vector<8x32xf32>
    %291 = vector.extract_strided_slice %289 {offsets = [0, 32], sizes = [8, 32], strides = [1, 1]} : vector<8x128xf32> to vector<8x32xf32>
    %292 = vector.extract_strided_slice %289 {offsets = [0, 96], sizes = [8, 32], strides = [1, 1]} : vector<8x128xf32> to vector<8x32xf32>
    %293 = vector.extract_strided_slice %284 {offsets = [0, 64], sizes = [8, 32], strides = [1, 1]} : vector<8x128xf32> to vector<8x32xf32>
    %294 = math.tanh %293 : vector<8x32xf32>
    %295 = arith.mulf %291, %252 : vector<8x32xf32>
    %296 = arith.mulf %290, %294 : vector<8x32xf32>
    %297 = arith.addf %295, %296 : vector<8x32xf32>
    %298 = math.tanh %297 : vector<8x32xf32>
    %299 = arith.mulf %292, %298 : vector<8x32xf32>
    %300 = arith.truncf %299 : vector<8x32xf32> to vector<8x32xbf16>
    %c0_91 = arith.constant 0 : index
    %c0_92 = arith.constant 0 : index
    %301 = vector.load %arg5[%c0_91, %c0_92] : memref<32x128xbf16, #tpu.memory_space<vmem>>, vector<32x128xbf16>
    %cst_93 = arith.constant dense<0.000000e+00> : vector<8x128xf32>
    %302 = tpu.matmul %300, %301, %cst_93 {dimension_numbers = #tpu.dot_dimension_numbers<[1], [0], [0], [1], [0, 0, 1, 1], [], []>} : vector<8x32xbf16>, vector<32x128xbf16>, vector<8x128xf32> -> vector<8x128xf32>
    %303 = arith.truncf %279 : vector<8x32xf32> to vector<8x32xbf16>
    %c0_94 = arith.constant 0 : index
    %c0_95 = arith.constant 0 : index
    %304 = vector.load %arg6[%c0_94, %c0_95] : memref<32x128xbf16, #tpu.memory_space<vmem>>, vector<32x128xbf16>
    %cst_96 = arith.constant dense<0.000000e+00> : vector<8x128xf32>
    %305 = tpu.matmul %303, %304, %cst_96 {dimension_numbers = #tpu.dot_dimension_numbers<[1], [0], [0], [1], [0, 0, 1, 1], [], []>} : vector<8x32xbf16>, vector<32x128xbf16>, vector<8x128xf32> -> vector<8x128xf32>
    %306 = arith.addf %302, %305 : vector<8x128xf32>
    %c0_97 = arith.constant 0 : index
    %c0_98 = arith.constant 0 : index
    %307 = vector.load %arg7[%c0_97, %c0_98] : memref<1x128xf32, #tpu.memory_space<vmem>>, vector<1x128xf32>
    %308 = vector.broadcast %307 : vector<1x128xf32> to vector<8x128xf32>
    %309 = arith.addf %306, %308 : vector<8x128xf32>
    %310 = arith.negf %309 : vector<8x128xf32>
    %311 = math.exp %310 : vector<8x128xf32>
    %cst_99 = arith.constant 1.000000e+00 : f32
    %312 = vector.broadcast %cst_99 : f32 to vector<8x128xf32>
    %313 = arith.addf %312, %311 : vector<8x128xf32>
    %314 = arith.divf %312, %313 : vector<8x128xf32>
    %315 = vector.extract_strided_slice %314 {offsets = [0, 0], sizes = [8, 32], strides = [1, 1]} : vector<8x128xf32> to vector<8x32xf32>
    %316 = vector.extract_strided_slice %314 {offsets = [0, 32], sizes = [8, 32], strides = [1, 1]} : vector<8x128xf32> to vector<8x32xf32>
    %317 = vector.extract_strided_slice %314 {offsets = [0, 96], sizes = [8, 32], strides = [1, 1]} : vector<8x128xf32> to vector<8x32xf32>
    %318 = vector.extract_strided_slice %309 {offsets = [0, 64], sizes = [8, 32], strides = [1, 1]} : vector<8x128xf32> to vector<8x32xf32>
    %319 = math.tanh %318 : vector<8x32xf32>
    %320 = arith.mulf %316, %277 : vector<8x32xf32>
    %321 = arith.mulf %315, %319 : vector<8x32xf32>
    %322 = arith.addf %320, %321 : vector<8x32xf32>
    %323 = math.tanh %322 : vector<8x32xf32>
    %324 = arith.mulf %317, %323 : vector<8x32xf32>
    %325 = vector.extract_strided_slice %5 {offsets = [56, 0], sizes = [8, 128], strides = [1, 1]} : vector<64x128xf32> to vector<8x128xf32>
    %326 = arith.truncf %299 : vector<8x32xf32> to vector<8x32xbf16>
    %c0_100 = arith.constant 0 : index
    %c0_101 = arith.constant 0 : index
    %327 = vector.load %arg3[%c0_100, %c0_101] : memref<32x128xbf16, #tpu.memory_space<vmem>>, vector<32x128xbf16>
    %cst_102 = arith.constant dense<0.000000e+00> : vector<8x128xf32>
    %328 = tpu.matmul %326, %327, %cst_102 {dimension_numbers = #tpu.dot_dimension_numbers<[1], [0], [0], [1], [0, 0, 1, 1], [], []>} : vector<8x32xbf16>, vector<32x128xbf16>, vector<8x128xf32> -> vector<8x128xf32>
    %329 = arith.addf %325, %328 : vector<8x128xf32>
    %330 = arith.negf %329 : vector<8x128xf32>
    %331 = math.exp %330 : vector<8x128xf32>
    %cst_103 = arith.constant 1.000000e+00 : f32
    %332 = vector.broadcast %cst_103 : f32 to vector<8x128xf32>
    %333 = arith.addf %332, %331 : vector<8x128xf32>
    %334 = arith.divf %332, %333 : vector<8x128xf32>
    %335 = vector.extract_strided_slice %334 {offsets = [0, 0], sizes = [8, 32], strides = [1, 1]} : vector<8x128xf32> to vector<8x32xf32>
    %336 = vector.extract_strided_slice %334 {offsets = [0, 32], sizes = [8, 32], strides = [1, 1]} : vector<8x128xf32> to vector<8x32xf32>
    %337 = vector.extract_strided_slice %334 {offsets = [0, 96], sizes = [8, 32], strides = [1, 1]} : vector<8x128xf32> to vector<8x32xf32>
    %338 = vector.extract_strided_slice %329 {offsets = [0, 64], sizes = [8, 32], strides = [1, 1]} : vector<8x128xf32> to vector<8x32xf32>
    %339 = math.tanh %338 : vector<8x32xf32>
    %340 = arith.mulf %336, %297 : vector<8x32xf32>
    %341 = arith.mulf %335, %339 : vector<8x32xf32>
    %342 = arith.addf %340, %341 : vector<8x32xf32>
    %343 = math.tanh %342 : vector<8x32xf32>
    %344 = arith.mulf %337, %343 : vector<8x32xf32>
    %345 = arith.truncf %344 : vector<8x32xf32> to vector<8x32xbf16>
    %c0_104 = arith.constant 0 : index
    %c0_105 = arith.constant 0 : index
    %346 = vector.load %arg5[%c0_104, %c0_105] : memref<32x128xbf16, #tpu.memory_space<vmem>>, vector<32x128xbf16>
    %cst_106 = arith.constant dense<0.000000e+00> : vector<8x128xf32>
    %347 = tpu.matmul %345, %346, %cst_106 {dimension_numbers = #tpu.dot_dimension_numbers<[1], [0], [0], [1], [0, 0, 1, 1], [], []>} : vector<8x32xbf16>, vector<32x128xbf16>, vector<8x128xf32> -> vector<8x128xf32>
    %348 = arith.truncf %324 : vector<8x32xf32> to vector<8x32xbf16>
    %c0_107 = arith.constant 0 : index
    %c0_108 = arith.constant 0 : index
    %349 = vector.load %arg6[%c0_107, %c0_108] : memref<32x128xbf16, #tpu.memory_space<vmem>>, vector<32x128xbf16>
    %cst_109 = arith.constant dense<0.000000e+00> : vector<8x128xf32>
    %350 = tpu.matmul %348, %349, %cst_109 {dimension_numbers = #tpu.dot_dimension_numbers<[1], [0], [0], [1], [0, 0, 1, 1], [], []>} : vector<8x32xbf16>, vector<32x128xbf16>, vector<8x128xf32> -> vector<8x128xf32>
    %351 = arith.addf %347, %350 : vector<8x128xf32>
    %c0_110 = arith.constant 0 : index
    %c0_111 = arith.constant 0 : index
    %352 = vector.load %arg7[%c0_110, %c0_111] : memref<1x128xf32, #tpu.memory_space<vmem>>, vector<1x128xf32>
    %353 = vector.broadcast %352 : vector<1x128xf32> to vector<8x128xf32>
    %354 = arith.addf %351, %353 : vector<8x128xf32>
    %355 = arith.negf %354 : vector<8x128xf32>
    %356 = math.exp %355 : vector<8x128xf32>
    %cst_112 = arith.constant 1.000000e+00 : f32
    %357 = vector.broadcast %cst_112 : f32 to vector<8x128xf32>
    %358 = arith.addf %357, %356 : vector<8x128xf32>
    %359 = arith.divf %357, %358 : vector<8x128xf32>
    %360 = vector.extract_strided_slice %359 {offsets = [0, 0], sizes = [8, 32], strides = [1, 1]} : vector<8x128xf32> to vector<8x32xf32>
    %361 = vector.extract_strided_slice %359 {offsets = [0, 32], sizes = [8, 32], strides = [1, 1]} : vector<8x128xf32> to vector<8x32xf32>
    %362 = vector.extract_strided_slice %359 {offsets = [0, 96], sizes = [8, 32], strides = [1, 1]} : vector<8x128xf32> to vector<8x32xf32>
    %363 = vector.extract_strided_slice %354 {offsets = [0, 64], sizes = [8, 32], strides = [1, 1]} : vector<8x128xf32> to vector<8x32xf32>
    %364 = math.tanh %363 : vector<8x32xf32>
    %365 = arith.mulf %361, %322 : vector<8x32xf32>
    %366 = arith.mulf %360, %364 : vector<8x32xf32>
    %367 = arith.addf %365, %366 : vector<8x32xf32>
    %368 = math.tanh %367 : vector<8x32xf32>
    %369 = arith.mulf %362, %368 : vector<8x32xf32>
    %c0_113 = arith.constant 0 : index
    %c0_114 = arith.constant 0 : index
    %370 = vector.load %arg0[%c0_113, %c0_114] : memref<8x1xf32, #tpu.memory_space<vmem>>, vector<8x1xf32>
    %371 = arith.truncf %369 : vector<8x32xf32> to vector<8x32xbf16>
    %c0_115 = arith.constant 0 : index
    %c0_116 = arith.constant 0 : index
    %372 = vector.load %arg8[%c0_115, %c0_116] : memref<32x128xbf16, #tpu.memory_space<vmem>>, vector<32x128xbf16>
    %cst_117 = arith.constant dense<0.000000e+00> : vector<8x128xf32>
    %373 = tpu.matmul %371, %372, %cst_117 {dimension_numbers = #tpu.dot_dimension_numbers<[1], [0], [0], [1], [0, 0, 1, 1], [], []>} : vector<8x32xbf16>, vector<32x128xbf16>, vector<8x128xf32> -> vector<8x128xf32>
    %c0_118 = arith.constant 0 : index
    %c0_119 = arith.constant 0 : index
    %374 = vector.load %arg9[%c0_118, %c0_119] : memref<1x128xf32, #tpu.memory_space<vmem>>, vector<1x128xf32>
    %375 = vector.broadcast %374 : vector<1x128xf32> to vector<8x128xf32>
    %376 = arith.addf %373, %375 : vector<8x128xf32>
    %377 = vector.broadcast %370 : vector<8x1xf32> to vector<8x128xf32>
    %378 = arith.mulf %376, %377 : vector<8x128xf32>
    %cst_120 = arith.constant dense<0.000000e+00> : vector<128xf32>
    %379 = vector.multi_reduction <add>, %378, %cst_120 [0] : vector<8x128xf32> to vector<128xf32>
    %380 = vector.shape_cast %379 : vector<128xf32> to vector<1x128xf32>
    %381 = vector.broadcast %380 : vector<1x128xf32> to vector<8x128xf32>
    %382 = arith.subf %376, %381 : vector<8x128xf32>
    %383 = arith.mulf %382, %382 : vector<8x128xf32>
    %384 = vector.broadcast %370 : vector<8x1xf32> to vector<8x128xf32>
    %385 = arith.mulf %383, %384 : vector<8x128xf32>
    %cst_121 = arith.constant dense<0.000000e+00> : vector<128xf32>
    %386 = vector.multi_reduction <add>, %385, %cst_121 [0] : vector<8x128xf32> to vector<128xf32>
    %387 = vector.shape_cast %386 : vector<128xf32> to vector<1x128xf32>
    %c0_122 = arith.constant 0 : index
    %c0_123 = arith.constant 0 : index
    %388 = vector.load %arg10[%c0_122, %c0_123] : memref<1x128xf32, #tpu.memory_space<vmem>>, vector<1x128xf32>
    %389 = vector.broadcast %388 : vector<1x128xf32> to vector<8x128xf32>
    %390 = arith.mulf %389, %382 : vector<8x128xf32>
    %cst_124 = arith.constant 9.99999974E-6 : f32
    %391 = vector.broadcast %cst_124 : f32 to vector<1x128xf32>
    %392 = arith.addf %387, %391 : vector<1x128xf32>
    %393 = math.rsqrt %392 : vector<1x128xf32>
    %394 = vector.broadcast %393 : vector<1x128xf32> to vector<8x128xf32>
    %395 = arith.mulf %390, %394 : vector<8x128xf32>
    %c0_125 = arith.constant 0 : index
    %c0_126 = arith.constant 0 : index
    %396 = vector.load %arg11[%c0_125, %c0_126] : memref<1x128xf32, #tpu.memory_space<vmem>>, vector<1x128xf32>
    %397 = vector.broadcast %396 : vector<1x128xf32> to vector<8x128xf32>
    %398 = arith.addf %395, %397 : vector<8x128xf32>
    %cst_127 = arith.constant 0.000000e+00 : f32
    %399 = vector.broadcast %cst_127 : f32 to vector<8x128xf32>
    %400 = arith.maximumf %398, %399 : vector<8x128xf32>
    %401 = arith.truncf %400 : vector<8x128xf32> to vector<8x128xbf16>
    %c0_128 = arith.constant 0 : index
    %c0_129 = arith.constant 0 : index
    %402 = vector.load %arg12[%c0_128, %c0_129] : memref<128x128xbf16, #tpu.memory_space<vmem>>, vector<128x128xbf16>
    %cst_130 = arith.constant dense<0.000000e+00> : vector<8x128xf32>
    %403 = tpu.matmul %401, %402, %cst_130 {dimension_numbers = #tpu.dot_dimension_numbers<[1], [0], [0], [1], [0, 0, 1, 1], [], []>} : vector<8x128xbf16>, vector<128x128xbf16>, vector<8x128xf32> -> vector<8x128xf32>
    %c0_131 = arith.constant 0 : index
    %c0_132 = arith.constant 0 : index
    %404 = vector.load %arg13[%c0_131, %c0_132] : memref<1x128xf32, #tpu.memory_space<vmem>>, vector<1x128xf32>
    %405 = vector.broadcast %404 : vector<1x128xf32> to vector<8x128xf32>
    %406 = arith.addf %403, %405 : vector<8x128xf32>
    %407 = vector.broadcast %370 : vector<8x1xf32> to vector<8x128xf32>
    %408 = arith.mulf %406, %407 : vector<8x128xf32>
    %cst_133 = arith.constant dense<0.000000e+00> : vector<128xf32>
    %409 = vector.multi_reduction <add>, %408, %cst_133 [0] : vector<8x128xf32> to vector<128xf32>
    %410 = vector.shape_cast %409 : vector<128xf32> to vector<1x128xf32>
    %411 = vector.broadcast %410 : vector<1x128xf32> to vector<8x128xf32>
    %412 = arith.subf %406, %411 : vector<8x128xf32>
    %413 = arith.mulf %412, %412 : vector<8x128xf32>
    %414 = vector.broadcast %370 : vector<8x1xf32> to vector<8x128xf32>
    %415 = arith.mulf %413, %414 : vector<8x128xf32>
    %cst_134 = arith.constant dense<0.000000e+00> : vector<128xf32>
    %416 = vector.multi_reduction <add>, %415, %cst_134 [0] : vector<8x128xf32> to vector<128xf32>
    %417 = vector.shape_cast %416 : vector<128xf32> to vector<1x128xf32>
    %c0_135 = arith.constant 0 : index
    %c0_136 = arith.constant 0 : index
    %418 = vector.load %arg14[%c0_135, %c0_136] : memref<1x128xf32, #tpu.memory_space<vmem>>, vector<1x128xf32>
    %419 = vector.broadcast %418 : vector<1x128xf32> to vector<8x128xf32>
    %420 = arith.mulf %419, %412 : vector<8x128xf32>
    %cst_137 = arith.constant 9.99999974E-6 : f32
    %421 = vector.broadcast %cst_137 : f32 to vector<1x128xf32>
    %422 = arith.addf %417, %421 : vector<1x128xf32>
    %423 = math.rsqrt %422 : vector<1x128xf32>
    %424 = vector.broadcast %423 : vector<1x128xf32> to vector<8x128xf32>
    %425 = arith.mulf %420, %424 : vector<8x128xf32>
    %c0_138 = arith.constant 0 : index
    %c0_139 = arith.constant 0 : index
    %426 = vector.load %arg15[%c0_138, %c0_139] : memref<1x128xf32, #tpu.memory_space<vmem>>, vector<1x128xf32>
    %427 = vector.broadcast %426 : vector<1x128xf32> to vector<8x128xf32>
    %428 = arith.addf %425, %427 : vector<8x128xf32>
    %cst_140 = arith.constant 0.000000e+00 : f32
    %429 = vector.broadcast %cst_140 : f32 to vector<8x128xf32>
    %430 = arith.maximumf %428, %429 : vector<8x128xf32>
    %431 = arith.truncf %430 : vector<8x128xf32> to vector<8x128xbf16>
    %c0_141 = arith.constant 0 : index
    %c0_142 = arith.constant 0 : index
    %432 = vector.load %arg16[%c0_141, %c0_142] : memref<128x128xbf16, #tpu.memory_space<vmem>>, vector<128x128xbf16>
    %cst_143 = arith.constant dense<0.000000e+00> : vector<8x128xf32>
    %433 = tpu.matmul %431, %432, %cst_143 {dimension_numbers = #tpu.dot_dimension_numbers<[1], [0], [0], [1], [0, 0, 1, 1], [], []>} : vector<8x128xbf16>, vector<128x128xbf16>, vector<8x128xf32> -> vector<8x128xf32>
    %c0_144 = arith.constant 0 : index
    %c0_145 = arith.constant 0 : index
    %434 = vector.load %arg17[%c0_144, %c0_145] : memref<1x128xf32, #tpu.memory_space<vmem>>, vector<1x128xf32>
    %435 = vector.broadcast %434 : vector<1x128xf32> to vector<8x128xf32>
    %436 = arith.addf %433, %435 : vector<8x128xf32>
    %c0_146 = arith.constant 0 : index
    %c0_147 = arith.constant 0 : index
    %437 = vector.load %arg18[%c0_146, %c0_147] : memref<8x128xf32, #tpu.memory_space<vmem>>, vector<8x128xf32>
    tpu.vector_store %arg18[%c0_146, %c0_147], %436 {strides = array<i32>} : memref<8x128xf32, #tpu.memory_space<vmem>>, vector<8x128xf32>,
    return
  }
}

</mosaic_0001>

<llo_original>
// kernel: tpu_custom_call.1
$region0: #{tpu_custom_call.1}
  #allocation0 [shape = 'u32[]', space=smem, size = 0x4, offset = 0x4, fixed_abs, tag = 'smem constant byte address 0x4 - core index']
  #allocation1 [shape = 'u32[144,128]{1,0:T(1,128)}', space=vmem, size = 0x12000, scoped, tag = 'internal scratch']
  %s0 = inlined_call_operand.vmem [shape: f32[8,1], index: 0, kind: input, shape index: {}]
  %s1 = inlined_call_operand.vmem [shape: bf16[64,8], index: 1, kind: input, shape index: {}]
  %s2 = inlined_call_operand.vmem [shape: bf16[8,128], index: 2, kind: input, shape index: {}]
  %s3 = inlined_call_operand.vmem [shape: bf16[32,128], index: 3, kind: input, shape index: {}]
  %s4 = inlined_call_operand.vmem [shape: f32[1,128], index: 4, kind: input, shape index: {}]
  %s5 = inlined_call_operand.hbm [shape: bf16[32,128], index: 5, kind: input, shape index: {}]
  %s6 = inlined_call_operand.hbm [shape: bf16[32,128], index: 6, kind: input, shape index: {}]
  %s7 = inlined_call_operand.vmem [shape: f32[1,128], index: 7, kind: input, shape index: {}]
  %s8 = inlined_call_operand.hbm [shape: bf16[32,128], index: 8, kind: input, shape index: {}]
  %s9 = inlined_call_operand.vmem [shape: f32[1,128], index: 9, kind: input, shape index: {}]
  %s10 = inlined_call_operand.vmem [shape: f32[1,128], index: 10, kind: input, shape index: {}]
  %s11 = inlined_call_operand.vmem [shape: f32[1,128], index: 11, kind: input, shape index: {}]
  %s12 = inlined_call_operand.vmem [shape: bf16[128,128], index: 12, kind: input, shape index: {}]
  %s13 = inlined_call_operand.vmem [shape: f32[1,128], index: 13, kind: input, shape index: {}]
  %s14 = inlined_call_operand.vmem [shape: f32[1,128], index: 14, kind: input, shape index: {}]
  %s15 = inlined_call_operand.vmem [shape: f32[1,128], index: 15, kind: input, shape index: {}]
  %s16 = inlined_call_operand.hbm [shape: bf16[128,128], index: 16, kind: input, shape index: {}]
  %s17 = inlined_call_operand.vmem [shape: f32[1,128], index: 17, kind: input, shape index: {}]
  %s18 = inlined_call_operand.hbm [shape: f32[8,128], index: 18, kind: output, shape index: {}]
  %s19 = sld [smem:[#allocation0]]
  $region98: #{tpu_custom_call.1} parent=0
    _
  %s21 = ssub.s32 1, %s19
  %s22 = scalar_select 0, %s21, %s19
  $region1: #{tpu_custom_call.1} parent=0
    #allocation2 [shape = 'u8[8192]{0}', space=vmem, size = 0x2000, scoped, tag = 'input window, operand 5, single buffered']
    #allocation3 [shape = 's32[1]{0}', space=sflag, size = 0x4, scoped, tag = 'scoped memory for tpu_custom_call.1']
    #allocation4 [shape = 's32[1]{0}', space=sflag, size = 0x4, scoped, tag = 'scoped memory for tpu_custom_call.1']
    #allocation5 [shape = 'u8[8192]{0}', space=vmem, size = 0x2000, scoped, tag = 'input window, operand 6, single buffered']
    #allocation6 [shape = 's32[1]{0}', space=sflag, size = 0x4, scoped, tag = 'scoped memory for tpu_custom_call.1']
    #allocation7 [shape = 'u8[8192]{0}', space=vmem, size = 0x2000, scoped, tag = 'input window, operand 8, single buffered']
    #allocation8 [shape = 'u8[32768]{0}', space=vmem, size = 0x8000, scoped, tag = 'input window, operand 16, single buffered']
    #allocation9 [shape = 's32[1]{0}', space=sflag, size = 0x4, scoped, tag = 'scoped memory for tpu_custom_call.1']
    #allocation10 [shape = 'u8[4096]{0}', space=vmem, size = 0x1000, scoped, tag = 'output window, operand 0, single buffered']
    %23 = vsyncpa [#allocation3], 0
    %24 = vsyncpa [#allocation6], 0
    %25 = vsyncpa [#allocation9], 0
    %26 = vsyncpa [#allocation4], 0
    // Predicated region
    $region2: #{tpu_custom_call.1} parent=1 // pred_check
      _
    $region3: #{tpu_custom_call.1} parent=1 // pred_check_branch
      %28 = sbr.rel (0) target = $region5
    $region4: #{tpu_custom_call.1} parent=1 // pred_region
      _
    $region5: #{tpu_custom_call.1} parent=1 // pred_fallthru
      _
    // Predicated region
    $region6: #{tpu_custom_call.1} parent=1 // pred_check
      _
    $region7: #{tpu_custom_call.1} parent=1 // pred_check_branch
      %30 = sbr.rel (0) target = $region9
    $region8: #{tpu_custom_call.1} parent=1 // pred_region
      _
    $region9: #{tpu_custom_call.1} parent=1 // pred_fallthru
      _
    // Predicated region
    $region10: #{tpu_custom_call.1} parent=1 // pred_check
      _
    $region11: #{tpu_custom_call.1} parent=1 // pred_check_branch
      %32 = sbr.rel (0) target = $region13
    $region12: #{tpu_custom_call.1} parent=1 // pred_region
      _
    $region13: #{tpu_custom_call.1} parent=1 // pred_fallthru
      _
    // Predicated region
    $region14: #{tpu_custom_call.1} parent=1 // pred_check
      _
    $region15: #{tpu_custom_call.1} parent=1 // pred_check_branch
      %34 = sbr.rel (0) target = $region17
    $region16: #{tpu_custom_call.1} parent=1 // pred_region
      _
    $region17: #{tpu_custom_call.1} parent=1 // pred_fallthru
      _
    // Predicated region
    $region18: #{tpu_custom_call.1} parent=1 // pred_check
      _
    $region19: #{tpu_custom_call.1} parent=1 // pred_check_branch
      %36 = sbr.rel (0) target = $region21
    $region20: #{tpu_custom_call.1} parent=1 // pred_region
      _
    $region21: #{tpu_custom_call.1} parent=1 // pred_fallthru
      _
    // Predicated region
    $region22: #{tpu_custom_call.1} parent=1 // pred_check
      _
    $region23: #{tpu_custom_call.1} parent=1 // pred_check_branch
      %38 = sbr.rel (0) target = $region25
    $region24: #{tpu_custom_call.1} parent=1 // pred_region
      %s40 = ssub.s32 256, 256
      %41 = vsyncadd [#allocation3], %s40
      %s42 = sshll.u32 [#allocation2], 4
      %s43 = int_to_ptr.vmem [resolvable:$true] %s42
      %48 = dma.hbm_to_vmem [thread:$0]  %s5, 256, %s43, [#allocation3], 64, 64, 4
    $region25: #{tpu_custom_call.1} parent=1 // pred_fallthru
      _
    // Predicated region
    $region26: #{tpu_custom_call.1} parent=1 // pred_check
      _
    $region27: #{tpu_custom_call.1} parent=1 // pred_check_branch
      %50 = sbr.rel (0) target = $region29
    $region28: #{tpu_custom_call.1} parent=1 // pred_region
      %s52 = ssub.s32 256, 256
      %53 = vsyncadd [#allocation6], %s52
      %s54 = sshll.u32 [#allocation5], 4
      %s55 = int_to_ptr.vmem [resolvable:$true] %s54
      %60 = dma.hbm_to_vmem [thread:$0]  %s6, 256, %s55, [#allocation6], 64, 64, 4
    $region29: #{tpu_custom_call.1} parent=1 // pred_fallthru
      _
    // Predicated region
    $region30: #{tpu_custom_call.1} parent=1 // pred_check
      _
    $region31: #{tpu_custom_call.1} parent=1 // pred_check_branch
      %62 = sbr.rel (0) target = $region33
    $region32: #{tpu_custom_call.1} parent=1 // pred_region
      _
    $region33: #{tpu_custom_call.1} parent=1 // pred_fallthru
      _
    // Predicated region
    $region34: #{tpu_custom_call.1} parent=1 // pred_check
      _
    $region35: #{tpu_custom_call.1} parent=1 // pred_check_branch
      %64 = sbr.rel (0) target = $region37
    $region36: #{tpu_custom_call.1} parent=1 // pred_region
      %s66 = ssub.s32 256, 256
      %67 = vsyncadd [#allocation6], %s66
      %s68 = sshll.u32 [#allocation7], 4
      %s69 = int_to_ptr.vmem [resolvable:$true] %s68
      %74 = dma.hbm_to_vmem [thread:$0]  %s8, 256, %s69, [#allocation6], 64, 64, 4
    $region37: #{tpu_custom_call.1} parent=1 // pred_fallthru
      _
    // Predicated region
    $region38: #{tpu_custom_call.1} parent=1 // pred_check
      _
    $region39: #{tpu_custom_call.1} parent=1 // pred_check_branch
      %76 = sbr.rel (0) target = $region41
    $region40: #{tpu_custom_call.1} parent=1 // pred_region
      _
    $region41: #{tpu_custom_call.1} parent=1 // pred_fallthru
      _
    // Predicated region
    $region42: #{tpu_custom_call.1} parent=1 // pred_check
      _
    $region43: #{tpu_custom_call.1} parent=1 // pred_check_branch
      %78 = sbr.rel (0) target = $region45
    $region44: #{tpu_custom_call.1} parent=1 // pred_region
      _
    $region45: #{tpu_custom_call.1} parent=1 // pred_fallthru
      _
    // Predicated region
    $region46: #{tpu_custom_call.1} parent=1 // pred_check
      _
    $region47: #{tpu_custom_call.1} parent=1 // pred_check_branch
      %80 = sbr.rel (0) target = $region49
    $region48: #{tpu_custom_call.1} parent=1 // pred_region
      _
    $region49: #{tpu_custom_call.1} parent=1 // pred_fallthru
      _
    // Predicated region
    $region50: #{tpu_custom_call.1} parent=1 // pred_check
      _
    $region51: #{tpu_custom_call.1} parent=1 // pred_check_branch
      %82 = sbr.rel (0) target = $region53
    $region52: #{tpu_custom_call.1} parent=1 // pred_region
      _
    $region53: #{tpu_custom_call.1} parent=1 // pred_fallthru
      _
    // Predicated region
    $region54: #{tpu_custom_call.1} parent=1 // pred_check
      _
    $region55: #{tpu_custom_call.1} parent=1 // pred_check_branch
      %84 = sbr.rel (0) target = $region57
    $region56: #{tpu_custom_call.1} parent=1 // pred_region
      _
    $region57: #{tpu_custom_call.1} parent=1 // pred_fallthru
      _
    // Predicated region
    $region58: #{tpu_custom_call.1} parent=1 // pred_check
      _
    $region59: #{tpu_custom_call.1} parent=1 // pred_check_branch
      %86 = sbr.rel (0) target = $region61
    $region60: #{tpu_custom_call.1} parent=1 // pred_region
      _
    $region61: #{tpu_custom_call.1} parent=1 // pred_fallthru
      _
    // Predicated region
    $region62: #{tpu_custom_call.1} parent=1 // pred_check
      _
    $region63: #{tpu_custom_call.1} parent=1 // pred_check_branch
      %88 = sbr.rel (0) target = $region65
    $region64: #{tpu_custom_call.1} parent=1 // pred_region
      _
    $region65: #{tpu_custom_call.1} parent=1 // pred_fallthru
      _
    // Predicated region
    $region66: #{tpu_custom_call.1} parent=1 // pred_check
      _
    $region67: #{tpu_custom_call.1} parent=1 // pred_check_branch
      %90 = sbr.rel (0) target = $region69
    $region68: #{tpu_custom_call.1} parent=1 // pred_region
      %s92 = ssub.s32 1024, 1024
      %93 = vsyncadd [#allocation9], %s92
      %s94 = sshll.u32 [#allocation8], 4
      %s95 = int_to_ptr.vmem [resolvable:$true] %s94
      %100 = dma.hbm_to_vmem [thread:$0]  %s16, 1024, %s95, [#allocation9], 64, 64, 4
    $region69: #{tpu_custom_call.1} parent=1 // pred_fallthru
      _
    // Predicated region
    $region70: #{tpu_custom_call.1} parent=1 // pred_check
      _
    $region71: #{tpu_custom_call.1} parent=1 // pred_check_branch
      %102 = sbr.rel (0) target = $region73
    $region72: #{tpu_custom_call.1} parent=1 // pred_region
      _
    $region73: #{tpu_custom_call.1} parent=1 // pred_fallthru
      _
    // Predicated region
    $region74: #{tpu_custom_call.1} parent=1 // pred_check
      _
    $region75: #{tpu_custom_call.1} parent=1 // pred_check_branch
      %104 = sbr.rel (0) target = $region77
    $region76: #{tpu_custom_call.1} parent=1 // pred_region
      %105 = dma.done [#allocation3], 256
    $region77: #{tpu_custom_call.1} parent=1 // pred_fallthru
      _
    // Predicated region
    $region78: #{tpu_custom_call.1} parent=1 // pred_check
      _
    $region79: #{tpu_custom_call.1} parent=1 // pred_check_branch
      %107 = sbr.rel (0) target = $region81
    $region80: #{tpu_custom_call.1} parent=1 // pred_region
      %108 = dma.done [#allocation6], 256
    $region81: #{tpu_custom_call.1} parent=1 // pred_fallthru
      _
    // Predicated region
    $region82: #{tpu_custom_call.1} parent=1 // pred_check
      _
    $region83: #{tpu_custom_call.1} parent=1 // pred_check_branch
      %110 = sbr.rel (0) target = $region85
    $region84: #{tpu_custom_call.1} parent=1 // pred_region
      %111 = dma.done [#allocation6], 256
    $region85: #{tpu_custom_call.1} parent=1 // pred_fallthru
      _
    // Predicated region
    $region86: #{tpu_custom_call.1} parent=1 // pred_check
      _
    $region87: #{tpu_custom_call.1} parent=1 // pred_check_branch
      %113 = sbr.rel (0) target = $region89
    $region88: #{tpu_custom_call.1} parent=1 // pred_region
      %114 = dma.done [#allocation9], 1024
    $region89: #{tpu_custom_call.1} parent=1 // pred_fallthru
      _
    %v116 = vld [vmem:[%s1] sm:$0xf]
    %v117 = vld [vmem:[%s1 + $0x4] sm:$0xf]
    %v118 = vld [vmem:[%s1 + $0x8] sm:$0xf]
    %v119 = vld [vmem:[%s1 + $0xc] sm:$0xf]
    %v120 = vld [vmem:[%s1 + $0x10] sm:$0xf]
    %v121 = vld [vmem:[%s1 + $0x14] sm:$0xf]
    %v122 = vld [vmem:[%s1 + $0x18] sm:$0xf]
    %v123 = vld [vmem:[%s1 + $0x1c] sm:$0xf]
    %v124 = vld [vmem:[%s2] sm:$0xf]
    %v125 = vld [vmem:[%s4] sm:$0x1]
    %v127 = vlaneseq
    %v128 = vshrl.u32 %v127, 7
    %v129 = vsub.s32 0, %v128
    %v130 = vrot.slane %v125, %v129
    %v140 = vunpack.c.l.b16 %v116
    %v141 = vunpack.c.l.b16 %v117
    %v142 = vunpack.c.l.b16 %v118
    %v143 = vunpack.c.l.b16 %v119
    %v144 = vunpack.c.l.b16 %v120
    %v145 = vunpack.c.l.b16 %v121
    %v146 = vunpack.c.l.b16 %v122
    %v147 = vunpack.c.l.b16 %v123
    %v148 = vpack.c.b16 %v141, %v140
    %v149 = vpack.c.b16 %v143, %v142
    %v150 = vpack.c.b16 %v145, %v144
    %v151 = vpack.c.b16 %v147, %v146
    %vm152 = vcmask 64512
    %v154 = vsel %vm152, %v148, 0
    %v157 = vsel %vm152, %v149, 0
    %v160 = vsel %vm152, %v150, 0
    %v163 = vsel %vm152, %v151, 0
    %vm165 = vcmask 1043456
    %v167 = vsel %vm165, %v124, 0
    %169 = vmatprep.subr.bf16.mxu0 0
    %170 = vmatpush1.bf16.msra.mxu0 %v167
    %171 = vmatprep.subr.bf16.mxu0 0
    %172 = vmatpush1.bf16.msra.mxu0 0
    %173 = vmatprep.subr.bf16.mxu0 0
    %174 = vmatpush1.bf16.msra.mxu0 0
    %175 = vmatprep.subr.bf16.mxu0 0
    %176 = vmatpush1.bf16.msra.mxu0 0
    %177 = vmatprep.subr.bf16.mxu0 0
    %178 = vmatpush1.bf16.msra.mxu0 0
    %179 = vmatprep.subr.bf16.mxu0 0
    %180 = vmatpush1.bf16.msra.mxu0 0
    %181 = vmatprep.subr.bf16.mxu0 0
    %182 = vmatpush1.bf16.msra.mxu0 0
    %183 = vmatprep.subr.bf16.mxu0 0
    %184 = vmatpush1.bf16.msra.mxu0 0
    %185 = vmatprep.subr.bf16.mxu0 0
    %186 = vmatpush1.bf16.msra.mxu0 0
    %187 = vmatprep.subr.bf16.mxu0 0
    %188 = vmatpush1.bf16.msra.mxu0 0
    %189 = vmatprep.subr.bf16.mxu0 0
    %190 = vmatpush1.bf16.msra.mxu0 0
    %191 = vmatprep.subr.bf16.mxu0 0
    %192 = vmatpush1.bf16.msra.mxu0 0
    %193 = vmatprep.subr.bf16.mxu0 0
    %194 = vmatpush1.bf16.msra.mxu0 0
    %195 = vmatprep.subr.bf16.mxu0 0
    %196 = vmatpush1.bf16.msra.mxu0 0
    %197 = vmatprep.subr.bf16.mxu0 0
    %198 = vmatpush1.bf16.msra.mxu0 0
    %199 = vmatprep.subr.bf16.mxu0 0
    %200 = vmatpush1.bf16.msra.mxu0 0
    %201 = vmatprep.mubr.bf16.mxu0 0
    %202 = vmatmul.mubr.bf16.gmra.mrb[0].mxu0 %v154
    %v203 = vpop.f32.mrb[0].mxu0
    %v204 = vadd.f32 %v130, %v203
    %v205 = vpop.f32.mrb[0].mxu0
    %v206 = vpop.f32.mrb[0].mxu0
    %v207 = vadd.f32 %v130, %v206
    %v208 = vpop.f32.mrb[0].mxu0
    %209 = vmatprep.mubr.bf16.mxu0 0
    %210 = vmatmul.mubr.bf16.gmra.mrb[0].mxu0 %v157
    %v211 = vpop.f32.mrb[0].mxu0
    %v212 = vadd.f32 %v130, %v211
    %v213 = vpop.f32.mrb[0].mxu0
    %v214 = vpop.f32.mrb[0].mxu0
    %v215 = vadd.f32 %v130, %v214
    %v216 = vpop.f32.mrb[0].mxu0
    %217 = vmatprep.mubr.bf16.mxu0 0
    %218 = vmatmul.mubr.bf16.gmra.mrb[0].mxu0 %v160
    %v219 = vpop.f32.mrb[0].mxu0
    %v220 = vadd.f32 %v130, %v219
    %v221 = vpop.f32.mrb[0].mxu0
    %v222 = vpop.f32.mrb[0].mxu0
    %v223 = vadd.f32 %v130, %v222
    %v224 = vpop.f32.mrb[0].mxu0
    %225 = vmatprep.mubr.bf16.mxu0 0
    %226 = vmatmul.mubr.bf16.gmra.mrb[0].mxu0 %v163
    %v227 = vpop.f32.mrb[0].mxu0
    %v228 = vadd.f32 %v130, %v227
    %v229 = vpop.f32.mrb[0].mxu0
    %v230 = vpop.f32.mrb[0].mxu0
    %v231 = vadd.f32 %v130, %v230
    %v232 = vpop.f32.mrb[0].mxu0
    %233 = vdwg.mxu0
    %v234 = vld [vmem:[%s3] sm:$0xf]
    %v235 = vld [vmem:[%s3 + $0x4] sm:$0xf]
    %v236 = vld [vmem:[%s3 + $0x8] sm:$0xf]
    %v237 = vld [vmem:[%s3 + $0xc] sm:$0xf]
    %v242 = vunpack.c.l.b16 %v234
    %v243 = vunpack.c.l.b16 %v235
    %v244 = vunpack.c.l.b16 %v236
    %v245 = vunpack.c.l.b16 %v237
    %v246 = vpack.c.b16 %v243, %v242
    %v247 = vpack.c.b16 %v245, %v244
    %vm250 = vcmask 261120
    %v252 = vsel %vm250, 0, 0
    %254 = vmatprep.subr.bf16.mxu0 0
    %255 = vmatpush1.bf16.msra.mxu0 %v246
    %256 = vmatprep.subr.bf16.mxu0 0
    %257 = vmatpush1.bf16.msra.mxu0 %v247
    %258 = vmatprep.subr.bf16.mxu0 0
    %259 = vmatpush1.bf16.msra.mxu0 0
    %260 = vmatprep.subr.bf16.mxu0 0
    %261 = vmatpush1.bf16.msra.mxu0 0
    %262 = vmatprep.subr.bf16.mxu0 0
    %263 = vmatpush1.bf16.msra.mxu0 0
    %264 = vmatprep.subr.bf16.mxu0 0
    %265 = vmatpush1.bf16.msra.mxu0 0
    %266 = vmatprep.subr.bf16.mxu0 0
    %267 = vmatpush1.bf16.msra.mxu0 0
    %268 = vmatprep.subr.bf16.mxu0 0
    %269 = vmatpush1.bf16.msra.mxu0 0
    %270 = vmatprep.subr.bf16.mxu0 0
    %271 = vmatpush1.bf16.msra.mxu0 0
    %272 = vmatprep.subr.bf16.mxu0 0
    %273 = vmatpush1.bf16.msra.mxu0 0
    %274 = vmatprep.subr.bf16.mxu0 0
    %275 = vmatpush1.bf16.msra.mxu0 0
    %276 = vmatprep.subr.bf16.mxu0 0
    %277 = vmatpush1.bf16.msra.mxu0 0
    %278 = vmatprep.subr.bf16.mxu0 0
    %279 = vmatpush1.bf16.msra.mxu0 0
    %280 = vmatprep.subr.bf16.mxu0 0
    %281 = vmatpush1.bf16.msra.mxu0 0
    %282 = vmatprep.subr.bf16.mxu0 0
    %283 = vmatpush1.bf16.msra.mxu0 0
    %284 = vmatprep.subr.bf16.mxu0 0
    %285 = vmatpush1.bf16.msra.mxu0 0
    %286 = vmatprep.mubr.bf16.mxu0 0
    %287 = vmatmul.mubr.bf16.gmra.mrb[0].mxu0 %v252
    %v288 = vpop.f32.mrb[0].mxu0
    %v289 = vadd.f32 0.0, %v288
    %v290 = vpop.f32.mrb[0].mxu0
    %v291 = vpop.f32.mrb[0].mxu0
    %v292 = vpop.f32.mrb[0].mxu0
    %293 = vdwg.mxu0
    %v294 = vadd.f32 %v204, %v289
    %v295 = vxor.u32 %v294, 2147483648
    %v296 = vmul.f32 %v295, 1.442695
    %v297 = vpow.pop %v296
    %v298 = vadd.f32 %v297, 1.0
    %v299 = vrcp.pop %v298
    %v300 = vmul.f32 1.0, %v299
    %v301 = vtanh.pop %v294
    %v302 = vmul.f32 %v300, 0.0
    %304 = vrot.lane.b32.xlu0 %v301, 64
    %v305 = vpop.permute.xlu0 %304
    %v307 = vmul.f32 %v300, %v305
    %309 = vrot.lane.b32.xlu0 %v307, 32
    %v310 = vpop.permute.xlu0 %309
    %v312 = vadd.f32 %v302, %v310
    %v313 = vtanh.pop %v312
    %315 = vrot.lane.b32.xlu0 %v313, 64
    %v316 = vpop.permute.xlu0 %315
    %v318 = vmul.f32 %v300, %v316
    %v319 = vpack.c.bf16 %v318, %v318
    %v320 = vld [vmem:[#allocation2] sm:$0xf]
    %v321 = vld [vmem:[#allocation2 + $0x4] sm:$0xf]
    %v322 = vld [vmem:[#allocation2 + $0x8] sm:$0xf]
    %v323 = vld [vmem:[#allocation2 + $0xc] sm:$0xf]
    %v324 = vld [vmem:[#allocation5] sm:$0xf]
    %v325 = vld [vmem:[#allocation5 + $0x4] sm:$0xf]
    %v326 = vld [vmem:[#allocation5 + $0x8] sm:$0xf]
    %v327 = vld [vmem:[#allocation5 + $0xc] sm:$0xf]
    %v332 = vunpack.c.l.b16 %v324
    %v333 = vunpack.c.l.b16 %v325
    %v334 = vunpack.c.l.b16 %v326
    %v335 = vunpack.c.l.b16 %v327
    %v336 = vpack.c.b16 %v333, %v332
    %v337 = vpack.c.b16 %v335, %v334
    %340 = vmatprep.subr.bf16.mxu0 0
    %341 = vmatpush1.bf16.msra.mxu0 %v336
    %342 = vmatprep.subr.bf16.mxu0 0
    %343 = vmatpush1.bf16.msra.mxu0 %v337
    %344 = vmatprep.subr.bf16.mxu0 0
    %345 = vmatpush1.bf16.msra.mxu0 0
    %346 = vmatprep.subr.bf16.mxu0 0
    %347 = vmatpush1.bf16.msra.mxu0 0
    %348 = vmatprep.subr.bf16.mxu0 0
    %349 = vmatpush1.bf16.msra.mxu0 0
    %350 = vmatprep.subr.bf16.mxu0 0
    %351 = vmatpush1.bf16.msra.mxu0 0
    %352 = vmatprep.subr.bf16.mxu0 0
    %353 = vmatpush1.bf16.msra.mxu0 0
    %354 = vmatprep.subr.bf16.mxu0 0
    %355 = vmatpush1.bf16.msra.mxu0 0
    %356 = vmatprep.subr.bf16.mxu0 0
    %357 = vmatpush1.bf16.msra.mxu0 0
    %358 = vmatprep.subr.bf16.mxu0 0
    %359 = vmatpush1.bf16.msra.mxu0 0
    %360 = vmatprep.subr.bf16.mxu0 0
    %361 = vmatpush1.bf16.msra.mxu0 0
    %362 = vmatprep.subr.bf16.mxu0 0
    %363 = vmatpush1.bf16.msra.mxu0 0
    %364 = vmatprep.subr.bf16.mxu0 0
    %365 = vmatpush1.bf16.msra.mxu0 0
    %366 = vmatprep.subr.bf16.mxu0 0
    %367 = vmatpush1.bf16.msra.mxu0 0
    %368 = vmatprep.subr.bf16.mxu0 0
    %369 = vmatpush1.bf16.msra.mxu0 0
    %370 = vmatprep.subr.bf16.mxu0 0
    %371 = vmatpush1.bf16.msra.mxu0 0
    %372 = vmatprep.mubr.bf16.mxu0 0
    %373 = vmatmul.mubr.bf16.gmra.mrb[0].mxu0 %v252
    %v374 = vpop.f32.mrb[0].mxu0
    %v375 = vadd.f32 0.0, %v374
    %v376 = vpop.f32.mrb[0].mxu0
    %v377 = vpop.f32.mrb[0].mxu0
    %v378 = vpop.f32.mrb[0].mxu0
    %379 = vdwg.mxu0
    %381 = vrot.lane.b32.xlu0 %v319, 32
    %v382 = vpop.permute.xlu0 %381
    %v387 = vunpack.c.l.b16 %v320
    %v388 = vunpack.c.l.b16 %v321
    %v389 = vunpack.c.l.b16 %v322
    %v390 = vunpack.c.l.b16 %v323
    %v391 = vpack.c.b16 %v388, %v387
    %v392 = vpack.c.b16 %v390, %v389
    %v396 = vsel %vm250, %v382, 0
    %398 = vmatprep.subr.bf16.mxu0 0
    %399 = vmatpush1.bf16.msra.mxu0 %v391
    %400 = vmatprep.subr.bf16.mxu0 0
    %401 = vmatpush1.bf16.msra.mxu0 %v392
    %402 = vmatprep.subr.bf16.mxu0 0
    %403 = vmatpush1.bf16.msra.mxu0 0
    %404 = vmatprep.subr.bf16.mxu0 0
    %405 = vmatpush1.bf16.msra.mxu0 0
    %406 = vmatprep.subr.bf16.mxu0 0
    %407 = vmatpush1.bf16.msra.mxu0 0
    %408 = vmatprep.subr.bf16.mxu0 0
    %409 = vmatpush1.bf16.msra.mxu0 0
    %410 = vmatprep.subr.bf16.mxu0 0
    %411 = vmatpush1.bf16.msra.mxu0 0
    %412 = vmatprep.subr.bf16.mxu0 0
    %413 = vmatpush1.bf16.msra.mxu0 0
    %414 = vmatprep.subr.bf16.mxu0 0
    %415 = vmatpush1.bf16.msra.mxu0 0
    %416 = vmatprep.subr.bf16.mxu0 0
    %417 = vmatpush1.bf16.msra.mxu0 0
    %418 = vmatprep.subr.bf16.mxu0 0
    %419 = vmatpush1.bf16.msra.mxu0 0
    %420 = vmatprep.subr.bf16.mxu0 0
    %421 = vmatpush1.bf16.msra.mxu0 0
    %422 = vmatprep.subr.bf16.mxu0 0
    %423 = vmatpush1.bf16.msra.mxu0 0
    %424 = vmatprep.subr.bf16.mxu0 0
    %425 = vmatpush1.bf16.msra.mxu0 0
    %426 = vmatprep.subr.bf16.mxu0 0
    %427 = vmatpush1.bf16.msra.mxu0 0
    %428 = vmatprep.subr.bf16.mxu0 0
    %429 = vmatpush1.bf16.msra.mxu0 0
    %430 = vmatprep.mubr.bf16.mxu0 0
    %431 = vmatmul.mubr.bf16.gmra.mrb[0].mxu0 %v396
    %v432 = vpop.f32.mrb[0].mxu0
    %v433 = vadd.f32 %v375, %v432
    %v434 = vpop.f32.mrb[0].mxu0
    %v435 = vpop.f32.mrb[0].mxu0
    %v436 = vpop.f32.mrb[0].mxu0
    %437 = vdwg.mxu0
    %v438 = vld [vmem:[%s7] sm:$0x1]
    %v440 = vlaneseq
    %v441 = vshrl.u32 %v440, 7
    %v442 = vsub.s32 0, %v441
    %v443 = vrot.slane %v438, %v442
    %v445 = vadd.f32 %v433, %v443
    %v446 = vxor.u32 %v445, 2147483648
    %v447 = vmul.f32 %v446, 1.442695
    %v448 = vpow.pop %v447
    %v449 = vadd.f32 %v448, 1.0
    %v450 = vrcp.pop %v449
    %v451 = vmul.f32 1.0, %v450
    %v452 = vtanh.pop %v445
    %v453 = vmul.f32 %v451, 0.0
    %455 = vrot.lane.b32.xlu0 %v452, 64
    %v456 = vpop.permute.xlu0 %455
    %v458 = vmul.f32 %v451, %v456
    %460 = vrot.lane.b32.xlu0 %v458, 32
    %v461 = vpop.permute.xlu0 %460
    %v463 = vadd.f32 %v453, %v461
    %v464 = vtanh.pop %v463
    %466 = vrot.lane.b32.xlu0 %v464, 64
    %v467 = vpop.permute.xlu0 %466
    %v469 = vmul.f32 %v451, %v467
    %470 = vmatprep.subr.bf16.mxu0 0
    %471 = vmatpush1.bf16.msra.mxu0 %v246
    %472 = vmatprep.subr.bf16.mxu0 0
    %473 = vmatpush1.bf16.msra.mxu0 %v247
    %474 = vmatprep.subr.bf16.mxu0 0
    %475 = vmatpush1.bf16.msra.mxu0 0
    %476 = vmatprep.subr.bf16.mxu0 0
    %477 = vmatpush1.bf16.msra.mxu0 0
    %478 = vmatprep.subr.bf16.mxu0 0
    %479 = vmatpush1.bf16.msra.mxu0 0
    %480 = vmatprep.subr.bf16.mxu0 0
    %481 = vmatpush1.bf16.msra.mxu0 0
    %482 = vmatprep.subr.bf16.mxu0 0
    %483 = vmatpush1.bf16.msra.mxu0 0
    %484 = vmatprep.subr.bf16.mxu0 0
    %485 = vmatpush1.bf16.msra.mxu0 0
    %486 = vmatprep.subr.bf16.mxu0 0
    %487 = vmatpush1.bf16.msra.mxu0 0
    %488 = vmatprep.subr.bf16.mxu0 0
    %489 = vmatpush1.bf16.msra.mxu0 0
    %490 = vmatprep.subr.bf16.mxu0 0
    %491 = vmatpush1.bf16.msra.mxu0 0
    %492 = vmatprep.subr.bf16.mxu0 0
    %493 = vmatpush1.bf16.msra.mxu0 0
    %494 = vmatprep.subr.bf16.mxu0 0
    %495 = vmatpush1.bf16.msra.mxu0 0
    %496 = vmatprep.subr.bf16.mxu0 0
    %497 = vmatpush1.bf16.msra.mxu0 0
    %498 = vmatprep.subr.bf16.mxu0 0
    %499 = vmatpush1.bf16.msra.mxu0 0
    %500 = vmatprep.subr.bf16.mxu0 0
    %501 = vmatpush1.bf16.msra.mxu0 0
    %502 = vmatprep.mubr.bf16.mxu0 0
    %503 = vmatmul.mubr.bf16.gmra.mrb[0].mxu0 %v396
    %v504 = vpop.f32.mrb[0].mxu0
    %v505 = vadd.f32 0.0, %v504
    %v506 = vpop.f32.mrb[0].mxu0
    %v507 = vpop.f32.mrb[0].mxu0
    %v508 = vpop.f32.mrb[0].mxu0
    %509 = vdwg.mxu0
    %v510 = vadd.f32 %v207, %v505
    %v511 = vxor.u32 %v510, 2147483648
    %v512 = vmul.f32 %v511, 1.442695
    %v513 = vpow.pop %v512
    %v514 = vadd.f32 %v513, 1.0
    %v515 = vrcp.pop %v514
    %v516 = vmul.f32 1.0, %v515
    %v517 = vtanh.pop %v510
    %v518 = vmul.f32 %v516, %v312
    %520 = vrot.lane.b32.xlu0 %v517, 64
    %v521 = vpop.permute.xlu0 %520
    %v523 = vmul.f32 %v516, %v521
    %525 = vrot.lane.b32.xlu0 %v523, 32
    %v526 = vpop.permute.xlu0 %525
    %v528 = vadd.f32 %v518, %v526
    %v529 = vtanh.pop %v528
    %531 = vrot.lane.b32.xlu0 %v529, 64
    %v532 = vpop.permute.xlu0 %531
    %v534 = vmul.f32 %v516, %v532
    %v535 = vpack.c.bf16 %v534, %v534
    %v536 = vpack.c.bf16 %v469, %v469
    %538 = vrot.lane.b32.xlu0 %v536, 32
    %v539 = vpop.permute.xlu0 %538
    %v541 = vsel %vm250, %v539, 0
    %543 = vmatprep.subr.bf16.mxu0 0
    %544 = vmatpush1.bf16.msra.mxu0 %v336
    %545 = vmatprep.subr.bf16.mxu0 0
    %546 = vmatpush1.bf16.msra.mxu0 %v337
    %547 = vmatprep.subr.bf16.mxu0 0
    %548 = vmatpush1.bf16.msra.mxu0 0
    %549 = vmatprep.subr.bf16.mxu0 0
    %550 = vmatpush1.bf16.msra.mxu0 0
    %551 = vmatprep.subr.bf16.mxu0 0
    %552 = vmatpush1.bf16.msra.mxu0 0
    %553 = vmatprep.subr.bf16.mxu0 0
    %554 = vmatpush1.bf16.msra.mxu0 0
    %555 = vmatprep.subr.bf16.mxu0 0
    %556 = vmatpush1.bf16.msra.mxu0 0
    %557 = vmatprep.subr.bf16.mxu0 0
    %558 = vmatpush1.bf16.msra.mxu0 0
    %559 = vmatprep.subr.bf16.mxu0 0
    %560 = vmatpush1.bf16.msra.mxu0 0
    %561 = vmatprep.subr.bf16.mxu0 0
    %562 = vmatpush1.bf16.msra.mxu0 0
    %563 = vmatprep.subr.bf16.mxu0 0
    %564 = vmatpush1.bf16.msra.mxu0 0
    %565 = vmatprep.subr.bf16.mxu0 0
    %566 = vmatpush1.bf16.msra.mxu0 0
    %567 = vmatprep.subr.bf16.mxu0 0
    %568 = vmatpush1.bf16.msra.mxu0 0
    %569 = vmatprep.subr.bf16.mxu0 0
    %570 = vmatpush1.bf16.msra.mxu0 0
    %571 = vmatprep.subr.bf16.mxu0 0
    %572 = vmatpush1.bf16.msra.mxu0 0
    %573 = vmatprep.subr.bf16.mxu0 0
    %574 = vmatpush1.bf16.msra.mxu0 0
    %575 = vmatprep.mubr.bf16.mxu0 0
    %576 = vmatmul.mubr.bf16.gmra.mrb[0].mxu0 %v541
    %v577 = vpop.f32.mrb[0].mxu0
    %v578 = vadd.f32 0.0, %v577
    %v579 = vpop.f32.mrb[0].mxu0
    %v580 = vpop.f32.mrb[0].mxu0
    %v581 = vpop.f32.mrb[0].mxu0
    %582 = vdwg.mxu0
    %584 = vrot.lane.b32.xlu0 %v535, 32
    %v585 = vpop.permute.xlu0 %584
    %v587 = vsel %vm250, %v585, 0
    %589 = vmatprep.subr.bf16.mxu0 0
    %590 = vmatpush1.bf16.msra.mxu0 %v391
    %591 = vmatprep.subr.bf16.mxu0 0
    %592 = vmatpush1.bf16.msra.mxu0 %v392
    %593 = vmatprep.subr.bf16.mxu0 0
    %594 = vmatpush1.bf16.msra.mxu0 0
    %595 = vmatprep.subr.bf16.mxu0 0
    %596 = vmatpush1.bf16.msra.mxu0 0
    %597 = vmatprep.subr.bf16.mxu0 0
    %598 = vmatpush1.bf16.msra.mxu0 0
    %599 = vmatprep.subr.bf16.mxu0 0
    %600 = vmatpush1.bf16.msra.mxu0 0
    %601 = vmatprep.subr.bf16.mxu0 0
    %602 = vmatpush1.bf16.msra.mxu0 0
    %603 = vmatprep.subr.bf16.mxu0 0
    %604 = vmatpush1.bf16.msra.mxu0 0
    %605 = vmatprep.subr.bf16.mxu0 0
    %606 = vmatpush1.bf16.msra.mxu0 0
    %607 = vmatprep.subr.bf16.mxu0 0
    %608 = vmatpush1.bf16.msra.mxu0 0
    %609 = vmatprep.subr.bf16.mxu0 0
    %610 = vmatpush1.bf16.msra.mxu0 0
    %611 = vmatprep.subr.bf16.mxu0 0
    %612 = vmatpush1.bf16.msra.mxu0 0
    %613 = vmatprep.subr.bf16.mxu0 0
    %614 = vmatpush1.bf16.msra.mxu0 0
    %615 = vmatprep.subr.bf16.mxu0 0
    %616 = vmatpush1.bf16.msra.mxu0 0
    %617 = vmatprep.subr.bf16.mxu0 0
    %618 = vmatpush1.bf16.msra.mxu0 0
    %619 = vmatprep.subr.bf16.mxu0 0
    %620 = vmatpush1.bf16.msra.mxu0 0
    %621 = vmatprep.mubr.bf16.mxu0 0
    %622 = vmatmul.mubr.bf16.gmra.mrb[0].mxu0 %v587
    %v623 = vpop.f32.mrb[0].mxu0
    %v624 = vadd.f32 %v578, %v623
    %v625 = vpop.f32.mrb[0].mxu0
    %v626 = vpop.f32.mrb[0].mxu0
    %v627 = vpop.f32.mrb[0].mxu0
    %628 = vdwg.mxu0
    %v629 = vadd.f32 %v624, %v443
    %v630 = vxor.u32 %v629, 2147483648
    %v631 = vmul.f32 %v630, 1.442695
    %v632 = vpow.pop %v631
    %v633 = vadd.f32 %v632, 1.0
    %v634 = vrcp.pop %v633
    %v635 = vmul.f32 1.0, %v634
    %v636 = vtanh.pop %v629
    %v637 = vmul.f32 %v635, %v463
    %639 = vrot.lane.b32.xlu0 %v636, 64
    %v640 = vpop.permute.xlu0 %639
    %v642 = vmul.f32 %v635, %v640
    %644 = vrot.lane.b32.xlu0 %v642, 32
    %v645 = vpop.permute.xlu0 %644
    %v647 = vadd.f32 %v637, %v645
    %v648 = vtanh.pop %v647
    %650 = vrot.lane.b32.xlu0 %v648, 64
    %v651 = vpop.permute.xlu0 %650
    %v653 = vmul.f32 %v635, %v651
    %654 = vmatprep.subr.bf16.mxu0 0
    %655 = vmatpush1.bf16.msra.mxu0 %v246
    %656 = vmatprep.subr.bf16.mxu0 0
    %657 = vmatpush1.bf16.msra.mxu0 %v247
    %658 = vmatprep.subr.bf16.mxu0 0
    %659 = vmatpush1.bf16.msra.mxu0 0
    %660 = vmatprep.subr.bf16.mxu0 0
    %661 = vmatpush1.bf16.msra.mxu0 0
    %662 = vmatprep.subr.bf16.mxu0 0
    %663 = vmatpush1.bf16.msra.mxu0 0
    %664 = vmatprep.subr.bf16.mxu0 0
    %665 = vmatpush1.bf16.msra.mxu0 0
    %666 = vmatprep.subr.bf16.mxu0 0
    %667 = vmatpush1.bf16.msra.mxu0 0
    %668 = vmatprep.subr.bf16.mxu0 0
    %669 = vmatpush1.bf16.msra.mxu0 0
    %670 = vmatprep.subr.bf16.mxu0 0
    %671 = vmatpush1.bf16.msra.mxu0 0
    %672 = vmatprep.subr.bf16.mxu0 0
    %673 = vmatpush1.bf16.msra.mxu0 0
    %674 = vmatprep.subr.bf16.mxu0 0
    %675 = vmatpush1.bf16.msra.mxu0 0
    %676 = vmatprep.subr.bf16.mxu0 0
    %677 = vmatpush1.bf16.msra.mxu0 0
    %678 = vmatprep.subr.bf16.mxu0 0
    %679 = vmatpush1.bf16.msra.mxu0 0
    %680 = vmatprep.subr.bf16.mxu0 0
    %681 = vmatpush1.bf16.msra.mxu0 0
    %682 = vmatprep.subr.bf16.mxu0 0
    %683 = vmatpush1.bf16.msra.mxu0 0
    %684 = vmatprep.subr.bf16.mxu0 0
    %685 = vmatpush1.bf16.msra.mxu0 0
    %686 = vmatprep.mubr.bf16.mxu0 0
    %687 = vmatmul.mubr.bf16.gmra.mrb[0].mxu0 %v587
    %v688 = vpop.f32.mrb[0].mxu0
    %v689 = vadd.f32 0.0, %v688
    %v690 = vpop.f32.mrb[0].mxu0
    %v691 = vpop.f32.mrb[0].mxu0
    %v692 = vpop.f32.mrb[0].mxu0
    %693 = vdwg.mxu0
    %v694 = vadd.f32 %v212, %v689
    %v695 = vxor.u32 %v694, 2147483648
    %v696 = vmul.f32 %v695, 1.442695
    %v697 = vpow.pop %v696
    %v698 = vadd.f32 %v697, 1.0
    %v699 = vrcp.pop %v698
    %v700 = vmul.f32 1.0, %v699
    %v701 = vtanh.pop %v694
    %v702 = vmul.f32 %v700, %v528
    %704 = vrot.lane.b32.xlu0 %v701, 64
    %v705 = vpop.permute.xlu0 %704
    %v707 = vmul.f32 %v700, %v705
    %709 = vrot.lane.b32.xlu0 %v707, 32
    %v710 = vpop.permute.xlu0 %709
    %v712 = vadd.f32 %v702, %v710
    %v713 = vtanh.pop %v712
    %715 = vrot.lane.b32.xlu0 %v713, 64
    %v716 = vpop.permute.xlu0 %715
    %v718 = vmul.f32 %v700, %v716
    %v719 = vpack.c.bf16 %v718, %v718
    %v720 = vpack.c.bf16 %v653, %v653
    %722 = vrot.lane.b32.xlu0 %v720, 32
    %v723 = vpop.permute.xlu0 %722
    %v725 = vsel %vm250, %v723, 0
    %727 = vmatprep.subr.bf16.mxu0 0
    %728 = vmatpush1.bf16.msra.mxu0 %v336
    %729 = vmatprep.subr.bf16.mxu0 0
    %730 = vmatpush1.bf16.msra.mxu0 %v337
    %731 = vmatprep.subr.bf16.mxu0 0
    %732 = vmatpush1.bf16.msra.mxu0 0
    %733 = vmatprep.subr.bf16.mxu0 0
    %734 = vmatpush1.bf16.msra.mxu0 0
    %735 = vmatprep.subr.bf16.mxu0 0
    %736 = vmatpush1.bf16.msra.mxu0 0
    %737 = vmatprep.subr.bf16.mxu0 0
    %738 = vmatpush1.bf16.msra.mxu0 0
    %739 = vmatprep.subr.bf16.mxu0 0
    %740 = vmatpush1.bf16.msra.mxu0 0
    %741 = vmatprep.subr.bf16.mxu0 0
    %742 = vmatpush1.bf16.msra.mxu0 0
    %743 = vmatprep.subr.bf16.mxu0 0
    %744 = vmatpush1.bf16.msra.mxu0 0
    %745 = vmatprep.subr.bf16.mxu0 0
    %746 = vmatpush1.bf16.msra.mxu0 0
    %747 = vmatprep.subr.bf16.mxu0 0
    %748 = vmatpush1.bf16.msra.mxu0 0
    %749 = vmatprep.subr.bf16.mxu0 0
    %750 = vmatpush1.bf16.msra.mxu0 0
    %751 = vmatprep.subr.bf16.mxu0 0
    %752 = vmatpush1.bf16.msra.mxu0 0
    %753 = vmatprep.subr.bf16.mxu0 0
    %754 = vmatpush1.bf16.msra.mxu0 0
    %755 = vmatprep.subr.bf16.mxu0 0
    %756 = vmatpush1.bf16.msra.mxu0 0
    %757 = vmatprep.subr.bf16.mxu0 0
    %758 = vmatpush1.bf16.msra.mxu0 0
    %759 = vmatprep.mubr.bf16.mxu0 0
    %760 = vmatmul.mubr.bf16.gmra.mrb[0].mxu0 %v725
    %v761 = vpop.f32.mrb[0].mxu0
    %v762 = vadd.f32 0.0, %v761
    %v763 = vpop.f32.mrb[0].mxu0
    %v764 = vpop.f32.mrb[0].mxu0
    %v765 = vpop.f32.mrb[0].mxu0
    %766 = vdwg.mxu0
    %768 = vrot.lane.b32.xlu0 %v719, 32
    %v769 = vpop.permute.xlu0 %768
    %v771 = vsel %vm250, %v769, 0
    %773 = vmatprep.subr.bf16.mxu0 0
    %774 = vmatpush1.bf16.msra.mxu0 %v391
    %775 = vmatprep.subr.bf16.mxu0 0
    %776 = vmatpush1.bf16.msra.mxu0 %v392
    %777 = vmatprep.subr.bf16.mxu0 0
    %778 = vmatpush1.bf16.msra.mxu0 0
    %779 = vmatprep.subr.bf16.mxu0 0
    %780 = vmatpush1.bf16.msra.mxu0 0
    %781 = vmatprep.subr.bf16.mxu0 0
    %782 = vmatpush1.bf16.msra.mxu0 0
    %783 = vmatprep.subr.bf16.mxu0 0
    %784 = vmatpush1.bf16.msra.mxu0 0
    %785 = vmatprep.subr.bf16.mxu0 0
    %786 = vmatpush1.bf16.msra.mxu0 0
    %787 = vmatprep.subr.bf16.mxu0 0
    %788 = vmatpush1.bf16.msra.mxu0 0
    %789 = vmatprep.subr.bf16.mxu0 0
    %790 = vmatpush1.bf16.msra.mxu0 0
    %791 = vmatprep.subr.bf16.mxu0 0
    %792 = vmatpush1.bf16.msra.mxu0 0
    %793 = vmatprep.subr.bf16.mxu0 0
    %794 = vmatpush1.bf16.msra.mxu0 0
    %795 = vmatprep.subr.bf16.mxu0 0
    %796 = vmatpush1.bf16.msra.mxu0 0
    %797 = vmatprep.subr.bf16.mxu0 0
    %798 = vmatpush1.bf16.msra.mxu0 0
    %799 = vmatprep.subr.bf16.mxu0 0
    %800 = vmatpush1.bf16.msra.mxu0 0
    %801 = vmatprep.subr.bf16.mxu0 0
    %802 = vmatpush1.bf16.msra.mxu0 0
    %803 = vmatprep.subr.bf16.mxu0 0
    %804 = vmatpush1.bf16.msra.mxu0 0
    %805 = vmatprep.mubr.bf16.mxu0 0
    %806 = vmatmul.mubr.bf16.gmra.mrb[0].mxu0 %v771
    %v807 = vpop.f32.mrb[0].mxu0
    %v808 = vadd.f32 %v762, %v807
    %v809 = vpop.f32.mrb[0].mxu0
    %v810 = vpop.f32.mrb[0].mxu0
    %v811 = vpop.f32.mrb[0].mxu0
    %812 = vdwg.mxu0
    %v813 = vadd.f32 %v808, %v443
    %v814 = vxor.u32 %v813, 2147483648
    %v815 = vmul.f32 %v814, 1.442695
    %v816 = vpow.pop %v815
    %v817 = vadd.f32 %v816, 1.0
    %v818 = vrcp.pop %v817
    %v819 = vmul.f32 1.0, %v818
    %v820 = vtanh.pop %v813
    %v821 = vmul.f32 %v819, %v647
    %823 = vrot.lane.b32.xlu0 %v820, 64
    %v824 = vpop.permute.xlu0 %823
    %v826 = vmul.f32 %v819, %v824
    %828 = vrot.lane.b32.xlu0 %v826, 32
    %v829 = vpop.permute.xlu0 %828
    %v831 = vadd.f32 %v821, %v829
    %v832 = vtanh.pop %v831
    %834 = vrot.lane.b32.xlu0 %v832, 64
    %v835 = vpop.permute.xlu0 %834
    %v837 = vmul.f32 %v819, %v835
    %838 = vmatprep.subr.bf16.mxu0 0
    %839 = vmatpush1.bf16.msra.mxu0 %v246
    %840 = vmatprep.subr.bf16.mxu0 0
    %841 = vmatpush1.bf16.msra.mxu0 %v247
    %842 = vmatprep.subr.bf16.mxu0 0
    %843 = vmatpush1.bf16.msra.mxu0 0
    %844 = vmatprep.subr.bf16.mxu0 0
    %845 = vmatpush1.bf16.msra.mxu0 0
    %846 = vmatprep.subr.bf16.mxu0 0
    %847 = vmatpush1.bf16.msra.mxu0 0
    %848 = vmatprep.subr.bf16.mxu0 0
    %849 = vmatpush1.bf16.msra.mxu0 0
    %850 = vmatprep.subr.bf16.mxu0 0
    %851 = vmatpush1.bf16.msra.mxu0 0
    %852 = vmatprep.subr.bf16.mxu0 0
    %853 = vmatpush1.bf16.msra.mxu0 0
    %854 = vmatprep.subr.bf16.mxu0 0
    %855 = vmatpush1.bf16.msra.mxu0 0
    %856 = vmatprep.subr.bf16.mxu0 0
    %857 = vmatpush1.bf16.msra.mxu0 0
    %858 = vmatprep.subr.bf16.mxu0 0
    %859 = vmatpush1.bf16.msra.mxu0 0
    %860 = vmatprep.subr.bf16.mxu0 0
    %861 = vmatpush1.bf16.msra.mxu0 0
    %862 = vmatprep.subr.bf16.mxu0 0
    %863 = vmatpush1.bf16.msra.mxu0 0
    %864 = vmatprep.subr.bf16.mxu0 0
    %865 = vmatpush1.bf16.msra.mxu0 0
    %866 = vmatprep.subr.bf16.mxu0 0
    %867 = vmatpush1.bf16.msra.mxu0 0
    %868 = vmatprep.subr.bf16.mxu0 0
    %869 = vmatpush1.bf16.msra.mxu0 0
    %870 = vmatprep.mubr.bf16.mxu0 0
    %871 = vmatmul.mubr.bf16.gmra.mrb[0].mxu0 %v771
    %v872 = vpop.f32.mrb[0].mxu0
    %v873 = vadd.f32 0.0, %v872
    %v874 = vpop.f32.mrb[0].mxu0
    %v875 = vpop.f32.mrb[0].mxu0
    %v876 = vpop.f32.mrb[0].mxu0
    %877 = vdwg.mxu0
    %v878 = vadd.f32 %v215, %v873
    %v879 = vxor.u32 %v878, 2147483648
    %v880 = vmul.f32 %v879, 1.442695
    %v881 = vpow.pop %v880
    %v882 = vadd.f32 %v881, 1.0
    %v883 = vrcp.pop %v882
    %v884 = vmul.f32 1.0, %v883
    %v885 = vtanh.pop %v878
    %v886 = vmul.f32 %v884, %v712
    %888 = vrot.lane.b32.xlu0 %v885, 64
    %v889 = vpop.permute.xlu0 %888
    %v891 = vmul.f32 %v884, %v889
    %893 = vrot.lane.b32.xlu0 %v891, 32
    %v894 = vpop.permute.xlu0 %893
    %v896 = vadd.f32 %v886, %v894
    %v897 = vtanh.pop %v896
    %899 = vrot.lane.b32.xlu0 %v897, 64
    %v900 = vpop.permute.xlu0 %899
    %v902 = vmul.f32 %v884, %v900
    %v903 = vpack.c.bf16 %v902, %v902
    %v904 = vpack.c.bf16 %v837, %v837
    %906 = vrot.lane.b32.xlu0 %v904, 32
    %v907 = vpop.permute.xlu0 %906
    %v909 = vsel %vm250, %v907, 0
    %911 = vmatprep.subr.bf16.mxu0 0
    %912 = vmatpush1.bf16.msra.mxu0 %v336
    %913 = vmatprep.subr.bf16.mxu0 0
    %914 = vmatpush1.bf16.msra.mxu0 %v337
    %915 = vmatprep.subr.bf16.mxu0 0
    %916 = vmatpush1.bf16.msra.mxu0 0
    %917 = vmatprep.subr.bf16.mxu0 0
    %918 = vmatpush1.bf16.msra.mxu0 0
    %919 = vmatprep.subr.bf16.mxu0 0
    %920 = vmatpush1.bf16.msra.mxu0 0
    %921 = vmatprep.subr.bf16.mxu0 0
    %922 = vmatpush1.bf16.msra.mxu0 0
    %923 = vmatprep.subr.bf16.mxu0 0
    %924 = vmatpush1.bf16.msra.mxu0 0
    %925 = vmatprep.subr.bf16.mxu0 0
    %926 = vmatpush1.bf16.msra.mxu0 0
    %927 = vmatprep.subr.bf16.mxu0 0
    %928 = vmatpush1.bf16.msra.mxu0 0
    %929 = vmatprep.subr.bf16.mxu0 0
    %930 = vmatpush1.bf16.msra.mxu0 0
    %931 = vmatprep.subr.bf16.mxu0 0
    %932 = vmatpush1.bf16.msra.mxu0 0
    %933 = vmatprep.subr.bf16.mxu0 0
    %934 = vmatpush1.bf16.msra.mxu0 0
    %935 = vmatprep.subr.bf16.mxu0 0
    %936 = vmatpush1.bf16.msra.mxu0 0
    %937 = vmatprep.subr.bf16.mxu0 0
    %938 = vmatpush1.bf16.msra.mxu0 0
    %939 = vmatprep.subr.bf16.mxu0 0
    %940 = vmatpush1.bf16.msra.mxu0 0
    %941 = vmatprep.subr.bf16.mxu0 0
    %942 = vmatpush1.bf16.msra.mxu0 0
    %943 = vmatprep.mubr.bf16.mxu0 0
    %944 = vmatmul.mubr.bf16.gmra.mrb[0].mxu0 %v909
    %v945 = vpop.f32.mrb[0].mxu0
    %v946 = vadd.f32 0.0, %v945
    %v947 = vpop.f32.mrb[0].mxu0
    %v948 = vpop.f32.mrb[0].mxu0
    %v949 = vpop.f32.mrb[0].mxu0
    %950 = vdwg.mxu0
    %952 = vrot.lane.b32.xlu0 %v903, 32
    %v953 = vpop.permute.xlu0 %952
    %v955 = vsel %vm250, %v953, 0
    %957 = vmatprep.subr.bf16.mxu0 0
    %958 = vmatpush1.bf16.msra.mxu0 %v391
    %959 = vmatprep.subr.bf16.mxu0 0
    %960 = vmatpush1.bf16.msra.mxu0 %v392
    %961 = vmatprep.subr.bf16.mxu0 0
    %962 = vmatpush1.bf16.msra.mxu0 0
    %963 = vmatprep.subr.bf16.mxu0 0
    %964 = vmatpush1.bf16.msra.mxu0 0
    %965 = vmatprep.subr.bf16.mxu0 0
    %966 = vmatpush1.bf16.msra.mxu0 0
    %967 = vmatprep.subr.bf16.mxu0 0
    %968 = vmatpush1.bf16.msra.mxu0 0
    %969 = vmatprep.subr.bf16.mxu0 0
    %970 = vmatpush1.bf16.msra.mxu0 0
    %971 = vmatprep.subr.bf16.mxu0 0
    %972 = vmatpush1.bf16.msra.mxu0 0
    %973 = vmatprep.subr.bf16.mxu0 0
    %974 = vmatpush1.bf16.msra.mxu0 0
    %975 = vmatprep.subr.bf16.mxu0 0
    %976 = vmatpush1.bf16.msra.mxu0 0
    %977 = vmatprep.subr.bf16.mxu0 0
    %978 = vmatpush1.bf16.msra.mxu0 0
    %979 = vmatprep.subr.bf16.mxu0 0
    %980 = vmatpush1.bf16.msra.mxu0 0
    %981 = vmatprep.subr.bf16.mxu0 0
    %982 = vmatpush1.bf16.msra.mxu0 0
    %983 = vmatprep.subr.bf16.mxu0 0
    %984 = vmatpush1.bf16.msra.mxu0 0
    %985 = vmatprep.subr.bf16.mxu0 0
    %986 = vmatpush1.bf16.msra.mxu0 0
    %987 = vmatprep.subr.bf16.mxu0 0
    %988 = vmatpush1.bf16.msra.mxu0 0
    %989 = vmatprep.mubr.bf16.mxu0 0
    %990 = vmatmul.mubr.bf16.gmra.mrb[0].mxu0 %v955
    %v991 = vpop.f32.mrb[0].mxu0
    %v992 = vadd.f32 %v946, %v991
    %v993 = vpop.f32.mrb[0].mxu0
    %v994 = vpop.f32.mrb[0].mxu0
    %v995 = vpop.f32.mrb[0].mxu0
    %996 = vdwg.mxu0
    %v997 = vadd.f32 %v992, %v443
    %v998 = vxor.u32 %v997, 2147483648
    %v999 = vmul.f32 %v998, 1.442695
    %v1000 = vpow.pop %v999
    %v1001 = vadd.f32 %v1000, 1.0
    %v1002 = vrcp.pop %v1001
    %v1003 = vmul.f32 1.0, %v1002
    %v1004 = vtanh.pop %v997
    %v1005 = vmul.f32 %v1003, %v831
    %1007 = vrot.lane.b32.xlu0 %v1004, 64
    %v1008 = vpop.permute.xlu0 %1007
    %v1010 = vmul.f32 %v1003, %v1008
    %1012 = vrot.lane.b32.xlu0 %v1010, 32
    %v1013 = vpop.permute.xlu0 %1012
    %v1015 = vadd.f32 %v1005, %v1013
    %v1016 = vtanh.pop %v1015
    %1018 = vrot.lane.b32.xlu0 %v1016, 64
    %v1019 = vpop.permute.xlu0 %1018
    %v1021 = vmul.f32 %v1003, %v1019
    %1022 = vmatprep.subr.bf16.mxu0 0
    %1023 = vmatpush1.bf16.msra.mxu0 %v246
    %1024 = vmatprep.subr.bf16.mxu0 0
    %1025 = vmatpush1.bf16.msra.mxu0 %v247
    %1026 = vmatprep.subr.bf16.mxu0 0
    %1027 = vmatpush1.bf16.msra.mxu0 0
    %1028 = vmatprep.subr.bf16.mxu0 0
    %1029 = vmatpush1.bf16.msra.mxu0 0
    %1030 = vmatprep.subr.bf16.mxu0 0
    %1031 = vmatpush1.bf16.msra.mxu0 0
    %1032 = vmatprep.subr.bf16.mxu0 0
    %1033 = vmatpush1.bf16.msra.mxu0 0
    %1034 = vmatprep.subr.bf16.mxu0 0
    %1035 = vmatpush1.bf16.msra.mxu0 0
    %1036 = vmatprep.subr.bf16.mxu0 0
    %1037 = vmatpush1.bf16.msra.mxu0 0
    %1038 = vmatprep.subr.bf16.mxu0 0
    %1039 = vmatpush1.bf16.msra.mxu0 0
    %1040 = vmatprep.subr.bf16.mxu0 0
    %1041 = vmatpush1.bf16.msra.mxu0 0
    %1042 = vmatprep.subr.bf16.mxu0 0
    %1043 = vmatpush1.bf16.msra.mxu0 0
    %1044 = vmatprep.subr.bf16.mxu0 0
    %1045 = vmatpush1.bf16.msra.mxu0 0
    %1046 = vmatprep.subr.bf16.mxu0 0
    %1047 = vmatpush1.bf16.msra.mxu0 0
    %1048 = vmatprep.subr.bf16.mxu0 0
    %1049 = vmatpush1.bf16.msra.mxu0 0
    %1050 = vmatprep.subr.bf16.mxu0 0
    %1051 = vmatpush1.bf16.msra.mxu0 0
    %1052 = vmatprep.subr.bf16.mxu0 0
    %1053 = vmatpush1.bf16.msra.mxu0 0
    %1054 = vmatprep.mubr.bf16.mxu0 0
    %1055 = vmatmul.mubr.bf16.gmra.mrb[0].mxu0 %v955
    %v1056 = vpop.f32.mrb[0].mxu0
    %v1057 = vadd.f32 0.0, %v1056
    %v1058 = vpop.f32.mrb[0].mxu0
    %v1059 = vpop.f32.mrb[0].mxu0
    %v1060 = vpop.f32.mrb[0].mxu0
    %1061 = vdwg.mxu0
    %v1062 = vadd.f32 %v220, %v1057
    %v1063 = vxor.u32 %v1062, 2147483648
    %v1064 = vmul.f32 %v1063, 1.442695
    %v1065 = vpow.pop %v1064
    %v1066 = vadd.f32 %v1065, 1.0
    %v1067 = vrcp.pop %v1066
    %v1068 = vmul.f32 1.0, %v1067
    %v1069 = vtanh.pop %v1062
    %v1070 = vmul.f32 %v1068, %v896
    %1072 = vrot.lane.b32.xlu0 %v1069, 64
    %v1073 = vpop.permute.xlu0 %1072
    %v1075 = vmul.f32 %v1068, %v1073
    %1077 = vrot.lane.b32.xlu0 %v1075, 32
    %v1078 = vpop.permute.xlu0 %1077
    %v1080 = vadd.f32 %v1070, %v1078
    %v1081 = vtanh.pop %v1080
    %1083 = vrot.lane.b32.xlu0 %v1081, 64
    %v1084 = vpop.permute.xlu0 %1083
    %v1086 = vmul.f32 %v1068, %v1084
    %v1087 = vpack.c.bf16 %v1086, %v1086
    %v1088 = vpack.c.bf16 %v1021, %v1021
    %1090 = vrot.lane.b32.xlu0 %v1088, 32
    %v1091 = vpop.permute.xlu0 %1090
    %v1093 = vsel %vm250, %v1091, 0
    %1095 = vmatprep.subr.bf16.mxu0 0
    %1096 = vmatpush1.bf16.msra.mxu0 %v336
    %1097 = vmatprep.subr.bf16.mxu0 0
    %1098 = vmatpush1.bf16.msra.mxu0 %v337
    %1099 = vmatprep.subr.bf16.mxu0 0
    %1100 = vmatpush1.bf16.msra.mxu0 0
    %1101 = vmatprep.subr.bf16.mxu0 0
    %1102 = vmatpush1.bf16.msra.mxu0 0
    %1103 = vmatprep.subr.bf16.mxu0 0
    %1104 = vmatpush1.bf16.msra.mxu0 0
    %1105 = vmatprep.subr.bf16.mxu0 0
    %1106 = vmatpush1.bf16.msra.mxu0 0
    %1107 = vmatprep.subr.bf16.mxu0 0
    %1108 = vmatpush1.bf16.msra.mxu0 0
    %1109 = vmatprep.subr.bf16.mxu0 0
    %1110 = vmatpush1.bf16.msra.mxu0 0
    %1111 = vmatprep.subr.bf16.mxu0 0
    %1112 = vmatpush1.bf16.msra.mxu0 0
    %1113 = vmatprep.subr.bf16.mxu0 0
    %1114 = vmatpush1.bf16.msra.mxu0 0
    %1115 = vmatprep.subr.bf16.mxu0 0
    %1116 = vmatpush1.bf16.msra.mxu0 0
    %1117 = vmatprep.subr.bf16.mxu0 0
    %1118 = vmatpush1.bf16.msra.mxu0 0
    %1119 = vmatprep.subr.bf16.mxu0 0
    %1120 = vmatpush1.bf16.msra.mxu0 0
    %1121 = vmatprep.subr.bf16.mxu0 0
    %1122 = vmatpush1.bf16.msra.mxu0 0
    %1123 = vmatprep.subr.bf16.mxu0 0
    %1124 = vmatpush1.bf16.msra.mxu0 0
    %1125 = vmatprep.subr.bf16.mxu0 0
    %1126 = vmatpush1.bf16.msra.mxu0 0
    %1127 = vmatprep.mubr.bf16.mxu0 0
    %1128 = vmatmul.mubr.bf16.gmra.mrb[0].mxu0 %v1093
    %v1129 = vpop.f32.mrb[0].mxu0
    %v1130 = vadd.f32 0.0, %v1129
    %v1131 = vpop.f32.mrb[0].mxu0
    %v1132 = vpop.f32.mrb[0].mxu0
    %v1133 = vpop.f32.mrb[0].mxu0
    %1134 = vdwg.mxu0
    %1136 = vrot.lane.b32.xlu0 %v1087, 32
    %v1137 = vpop.permute.xlu0 %1136
    %v1139 = vsel %vm250, %v1137, 0
    %1141 = vmatprep.subr.bf16.mxu0 0
    %1142 = vmatpush1.bf16.msra.mxu0 %v391
    %1143 = vmatprep.subr.bf16.mxu0 0
    %1144 = vmatpush1.bf16.msra.mxu0 %v392
    %1145 = vmatprep.subr.bf16.mxu0 0
    %1146 = vmatpush1.bf16.msra.mxu0 0
    %1147 = vmatprep.subr.bf16.mxu0 0
    %1148 = vmatpush1.bf16.msra.mxu0 0
    %1149 = vmatprep.subr.bf16.mxu0 0
    %1150 = vmatpush1.bf16.msra.mxu0 0
    %1151 = vmatprep.subr.bf16.mxu0 0
    %1152 = vmatpush1.bf16.msra.mxu0 0
    %1153 = vmatprep.subr.bf16.mxu0 0
    %1154 = vmatpush1.bf16.msra.mxu0 0
    %1155 = vmatprep.subr.bf16.mxu0 0
    %1156 = vmatpush1.bf16.msra.mxu0 0
    %1157 = vmatprep.subr.bf16.mxu0 0
    %1158 = vmatpush1.bf16.msra.mxu0 0
    %1159 = vmatprep.subr.bf16.mxu0 0
    %1160 = vmatpush1.bf16.msra.mxu0 0
    %1161 = vmatprep.subr.bf16.mxu0 0
    %1162 = vmatpush1.bf16.msra.mxu0 0
    %1163 = vmatprep.subr.bf16.mxu0 0
    %1164 = vmatpush1.bf16.msra.mxu0 0
    %1165 = vmatprep.subr.bf16.mxu0 0
    %1166 = vmatpush1.bf16.msra.mxu0 0
    %1167 = vmatprep.subr.bf16.mxu0 0
    %1168 = vmatpush1.bf16.msra.mxu0 0
    %1169 = vmatprep.subr.bf16.mxu0 0
    %1170 = vmatpush1.bf16.msra.mxu0 0
    %1171 = vmatprep.subr.bf16.mxu0 0
    %1172 = vmatpush1.bf16.msra.mxu0 0
    %1173 = vmatprep.mubr.bf16.mxu0 0
    %1174 = vmatmul.mubr.bf16.gmra.mrb[0].mxu0 %v1139
    %v1175 = vpop.f32.mrb[0].mxu0
    %v1176 = vadd.f32 %v1130, %v1175
    %v1177 = vpop.f32.mrb[0].mxu0
    %v1178 = vpop.f32.mrb[0].mxu0
    %v1179 = vpop.f32.mrb[0].mxu0
    %1180 = vdwg.mxu0
    %v1181 = vadd.f32 %v1176, %v443
    %v1182 = vxor.u32 %v1181, 2147483648
    %v1183 = vmul.f32 %v1182, 1.442695
    %v1184 = vpow.pop %v1183
    %v1185 = vadd.f32 %v1184, 1.0
    %v1186 = vrcp.pop %v1185
    %v1187 = vmul.f32 1.0, %v1186
    %v1188 = vtanh.pop %v1181
    %v1189 = vmul.f32 %v1187, %v1015
    %1191 = vrot.lane.b32.xlu0 %v1188, 64
    %v1192 = vpop.permute.xlu0 %1191
    %v1194 = vmul.f32 %v1187, %v1192
    %1196 = vrot.lane.b32.xlu0 %v1194, 32
    %v1197 = vpop.permute.xlu0 %1196
    %v1199 = vadd.f32 %v1189, %v1197
    %v1200 = vtanh.pop %v1199
    %1202 = vrot.lane.b32.xlu0 %v1200, 64
    %v1203 = vpop.permute.xlu0 %1202
    %v1205 = vmul.f32 %v1187, %v1203
    %1206 = vmatprep.subr.bf16.mxu0 0
    %1207 = vmatpush1.bf16.msra.mxu0 %v246
    %1208 = vmatprep.subr.bf16.mxu0 0
    %1209 = vmatpush1.bf16.msra.mxu0 %v247
    %1210 = vmatprep.subr.bf16.mxu0 0
    %1211 = vmatpush1.bf16.msra.mxu0 0
    %1212 = vmatprep.subr.bf16.mxu0 0
    %1213 = vmatpush1.bf16.msra.mxu0 0
    %1214 = vmatprep.subr.bf16.mxu0 0
    %1215 = vmatpush1.bf16.msra.mxu0 0
    %1216 = vmatprep.subr.bf16.mxu0 0
    %1217 = vmatpush1.bf16.msra.mxu0 0
    %1218 = vmatprep.subr.bf16.mxu0 0
    %1219 = vmatpush1.bf16.msra.mxu0 0
    %1220 = vmatprep.subr.bf16.mxu0 0
    %1221 = vmatpush1.bf16.msra.mxu0 0
    %1222 = vmatprep.subr.bf16.mxu0 0
    %1223 = vmatpush1.bf16.msra.mxu0 0
    %1224 = vmatprep.subr.bf16.mxu0 0
    %1225 = vmatpush1.bf16.msra.mxu0 0
    %1226 = vmatprep.subr.bf16.mxu0 0
    %1227 = vmatpush1.bf16.msra.mxu0 0
    %1228 = vmatprep.subr.bf16.mxu0 0
    %1229 = vmatpush1.bf16.msra.mxu0 0
    %1230 = vmatprep.subr.bf16.mxu0 0
    %1231 = vmatpush1.bf16.msra.mxu0 0
    %1232 = vmatprep.subr.bf16.mxu0 0
    %1233 = vmatpush1.bf16.msra.mxu0 0
    %1234 = vmatprep.subr.bf16.mxu0 0
    %1235 = vmatpush1.bf16.msra.mxu0 0
    %1236 = vmatprep.subr.bf16.mxu0 0
    %1237 = vmatpush1.bf16.msra.mxu0 0
    %1238 = vmatprep.mubr.bf16.mxu0 0
    %1239 = vmatmul.mubr.bf16.gmra.mrb[0].mxu0 %v1139
    %v1240 = vpop.f32.mrb[0].mxu0
    %v1241 = vadd.f32 0.0, %v1240
    %v1242 = vpop.f32.mrb[0].mxu0
    %v1243 = vpop.f32.mrb[0].mxu0
    %v1244 = vpop.f32.mrb[0].mxu0
    %1245 = vdwg.mxu0
    %v1246 = vadd.f32 %v223, %v1241
    %v1247 = vxor.u32 %v1246, 2147483648
    %v1248 = vmul.f32 %v1247, 1.442695
    %v1249 = vpow.pop %v1248
    %v1250 = vadd.f32 %v1249, 1.0
    %v1251 = vrcp.pop %v1250
    %v1252 = vmul.f32 1.0, %v1251
    %v1253 = vtanh.pop %v1246
    %v1254 = vmul.f32 %v1252, %v1080
    %1256 = vrot.lane.b32.xlu0 %v1253, 64
    %v1257 = vpop.permute.xlu0 %1256
    %v1259 = vmul.f32 %v1252, %v1257
    %1261 = vrot.lane.b32.xlu0 %v1259, 32
    %v1262 = vpop.permute.xlu0 %1261
    %v1264 = vadd.f32 %v1254, %v1262
    %v1265 = vtanh.pop %v1264
    %1267 = vrot.lane.b32.xlu0 %v1265, 64
    %v1268 = vpop.permute.xlu0 %1267
    %v1270 = vmul.f32 %v1252, %v1268
    %v1271 = vpack.c.bf16 %v1270, %v1270
    %v1272 = vpack.c.bf16 %v1205, %v1205
    %1274 = vrot.lane.b32.xlu0 %v1272, 32
    %v1275 = vpop.permute.xlu0 %1274
    %v1277 = vsel %vm250, %v1275, 0
    %1279 = vmatprep.subr.bf16.mxu0 0
    %1280 = vmatpush1.bf16.msra.mxu0 %v336
    %1281 = vmatprep.subr.bf16.mxu0 0
    %1282 = vmatpush1.bf16.msra.mxu0 %v337
    %1283 = vmatprep.subr.bf16.mxu0 0
    %1284 = vmatpush1.bf16.msra.mxu0 0
    %1285 = vmatprep.subr.bf16.mxu0 0
    %1286 = vmatpush1.bf16.msra.mxu0 0
    %1287 = vmatprep.subr.bf16.mxu0 0
    %1288 = vmatpush1.bf16.msra.mxu0 0
    %1289 = vmatprep.subr.bf16.mxu0 0
    %1290 = vmatpush1.bf16.msra.mxu0 0
    %1291 = vmatprep.subr.bf16.mxu0 0
    %1292 = vmatpush1.bf16.msra.mxu0 0
    %1293 = vmatprep.subr.bf16.mxu0 0
    %1294 = vmatpush1.bf16.msra.mxu0 0
    %1295 = vmatprep.subr.bf16.mxu0 0
    %1296 = vmatpush1.bf16.msra.mxu0 0
    %1297 = vmatprep.subr.bf16.mxu0 0
    %1298 = vmatpush1.bf16.msra.mxu0 0
    %1299 = vmatprep.subr.bf16.mxu0 0
    %1300 = vmatpush1.bf16.msra.mxu0 0
    %1301 = vmatprep.subr.bf16.mxu0 0
    %1302 = vmatpush1.bf16.msra.mxu0 0
    %1303 = vmatprep.subr.bf16.mxu0 0
    %1304 = vmatpush1.bf16.msra.mxu0 0
    %1305 = vmatprep.subr.bf16.mxu0 0
    %1306 = vmatpush1.bf16.msra.mxu0 0
    %1307 = vmatprep.subr.bf16.mxu0 0
    %1308 = vmatpush1.bf16.msra.mxu0 0
    %1309 = vmatprep.subr.bf16.mxu0 0
    %1310 = vmatpush1.bf16.msra.mxu0 0
    %1311 = vmatprep.mubr.bf16.mxu0 0
    %1312 = vmatmul.mubr.bf16.gmra.mrb[0].mxu0 %v1277
    %v1313 = vpop.f32.mrb[0].mxu0
    %v1314 = vadd.f32 0.0, %v1313
    %v1315 = vpop.f32.mrb[0].mxu0
    %v1316 = vpop.f32.mrb[0].mxu0
    %v1317 = vpop.f32.mrb[0].mxu0
    %1318 = vdwg.mxu0
    %1320 = vrot.lane.b32.xlu0 %v1271, 32
    %v1321 = vpop.permute.xlu0 %1320
    %v1323 = vsel %vm250, %v1321, 0
    %1325 = vmatprep.subr.bf16.mxu0 0
    %1326 = vmatpush1.bf16.msra.mxu0 %v391
    %1327 = vmatprep.subr.bf16.mxu0 0
    %1328 = vmatpush1.bf16.msra.mxu0 %v392
    %1329 = vmatprep.subr.bf16.mxu0 0
    %1330 = vmatpush1.bf16.msra.mxu0 0
    %1331 = vmatprep.subr.bf16.mxu0 0
    %1332 = vmatpush1.bf16.msra.mxu0 0
    %1333 = vmatprep.subr.bf16.mxu0 0
    %1334 = vmatpush1.bf16.msra.mxu0 0
    %1335 = vmatprep.subr.bf16.mxu0 0
    %1336 = vmatpush1.bf16.msra.mxu0 0
    %1337 = vmatprep.subr.bf16.mxu0 0
    %1338 = vmatpush1.bf16.msra.mxu0 0
    %1339 = vmatprep.subr.bf16.mxu0 0
    %1340 = vmatpush1.bf16.msra.mxu0 0
    %1341 = vmatprep.subr.bf16.mxu0 0
    %1342 = vmatpush1.bf16.msra.mxu0 0
    %1343 = vmatprep.subr.bf16.mxu0 0
    %1344 = vmatpush1.bf16.msra.mxu0 0
    %1345 = vmatprep.subr.bf16.mxu0 0
    %1346 = vmatpush1.bf16.msra.mxu0 0
    %1347 = vmatprep.subr.bf16.mxu0 0
    %1348 = vmatpush1.bf16.msra.mxu0 0
    %1349 = vmatprep.subr.bf16.mxu0 0
    %1350 = vmatpush1.bf16.msra.mxu0 0
    %1351 = vmatprep.subr.bf16.mxu0 0
    %1352 = vmatpush1.bf16.msra.mxu0 0
    %1353 = vmatprep.subr.bf16.mxu0 0
    %1354 = vmatpush1.bf16.msra.mxu0 0
    %1355 = vmatprep.subr.bf16.mxu0 0
    %1356 = vmatpush1.bf16.msra.mxu0 0
    %1357 = vmatprep.mubr.bf16.mxu0 0
    %1358 = vmatmul.mubr.bf16.gmra.mrb[0].mxu0 %v1323
    %v1359 = vpop.f32.mrb[0].mxu0
    %v1360 = vadd.f32 %v1314, %v1359
    %v1361 = vpop.f32.mrb[0].mxu0
    %v1362 = vpop.f32.mrb[0].mxu0
    %v1363 = vpop.f32.mrb[0].mxu0
    %1364 = vdwg.mxu0
    %v1365 = vadd.f32 %v1360, %v443
    %v1366 = vxor.u32 %v1365, 2147483648
    %v1367 = vmul.f32 %v1366, 1.442695
    %v1368 = vpow.pop %v1367
    %v1369 = vadd.f32 %v1368, 1.0
    %v1370 = vrcp.pop %v1369
    %v1371 = vmul.f32 1.0, %v1370
    %v1372 = vtanh.pop %v1365
    %v1373 = vmul.f32 %v1371, %v1199
    %1375 = vrot.lane.b32.xlu0 %v1372, 64
    %v1376 = vpop.permute.xlu0 %1375
    %v1378 = vmul.f32 %v1371, %v1376
    %1380 = vrot.lane.b32.xlu0 %v1378, 32
    %v1381 = vpop.permute.xlu0 %1380
    %v1383 = vadd.f32 %v1373, %v1381
    %v1384 = vtanh.pop %v1383
    %1386 = vrot.lane.b32.xlu0 %v1384, 64
    %v1387 = vpop.permute.xlu0 %1386
    %v1389 = vmul.f32 %v1371, %v1387
    %1390 = vmatprep.subr.bf16.mxu0 0
    %1391 = vmatpush1.bf16.msra.mxu0 %v246
    %1392 = vmatprep.subr.bf16.mxu0 0
    %1393 = vmatpush1.bf16.msra.mxu0 %v247
    %1394 = vmatprep.subr.bf16.mxu0 0
    %1395 = vmatpush1.bf16.msra.mxu0 0
    %1396 = vmatprep.subr.bf16.mxu0 0
    %1397 = vmatpush1.bf16.msra.mxu0 0
    %1398 = vmatprep.subr.bf16.mxu0 0
    %1399 = vmatpush1.bf16.msra.mxu0 0
    %1400 = vmatprep.subr.bf16.mxu0 0
    %1401 = vmatpush1.bf16.msra.mxu0 0
    %1402 = vmatprep.subr.bf16.mxu0 0
    %1403 = vmatpush1.bf16.msra.mxu0 0
    %1404 = vmatprep.subr.bf16.mxu0 0
    %1405 = vmatpush1.bf16.msra.mxu0 0
    %1406 = vmatprep.subr.bf16.mxu0 0
    %1407 = vmatpush1.bf16.msra.mxu0 0
    %1408 = vmatprep.subr.bf16.mxu0 0
    %1409 = vmatpush1.bf16.msra.mxu0 0
    %1410 = vmatprep.subr.bf16.mxu0 0
    %1411 = vmatpush1.bf16.msra.mxu0 0
    %1412 = vmatprep.subr.bf16.mxu0 0
    %1413 = vmatpush1.bf16.msra.mxu0 0
    %1414 = vmatprep.subr.bf16.mxu0 0
    %1415 = vmatpush1.bf16.msra.mxu0 0
    %1416 = vmatprep.subr.bf16.mxu0 0
    %1417 = vmatpush1.bf16.msra.mxu0 0
    %1418 = vmatprep.subr.bf16.mxu0 0
    %1419 = vmatpush1.bf16.msra.mxu0 0
    %1420 = vmatprep.subr.bf16.mxu0 0
    %1421 = vmatpush1.bf16.msra.mxu0 0
    %1422 = vmatprep.mubr.bf16.mxu0 0
    %1423 = vmatmul.mubr.bf16.gmra.mrb[0].mxu0 %v1323
    %v1424 = vpop.f32.mrb[0].mxu0
    %v1425 = vadd.f32 0.0, %v1424
    %v1426 = vpop.f32.mrb[0].mxu0
    %v1427 = vpop.f32.mrb[0].mxu0
    %v1428 = vpop.f32.mrb[0].mxu0
    %1429 = vdwg.mxu0
    %v1430 = vadd.f32 %v228, %v1425
    %v1431 = vxor.u32 %v1430, 2147483648
    %v1432 = vmul.f32 %v1431, 1.442695
    %v1433 = vpow.pop %v1432
    %v1434 = vadd.f32 %v1433, 1.0
    %v1435 = vrcp.pop %v1434
    %v1436 = vmul.f32 1.0, %v1435
    %v1437 = vtanh.pop %v1430
    %v1438 = vmul.f32 %v1436, %v1264
    %1440 = vrot.lane.b32.xlu0 %v1437, 64
    %v1441 = vpop.permute.xlu0 %1440
    %v1443 = vmul.f32 %v1436, %v1441
    %1445 = vrot.lane.b32.xlu0 %v1443, 32
    %v1446 = vpop.permute.xlu0 %1445
    %v1448 = vadd.f32 %v1438, %v1446
    %v1449 = vtanh.pop %v1448
    %1451 = vrot.lane.b32.xlu0 %v1449, 64
    %v1452 = vpop.permute.xlu0 %1451
    %v1454 = vmul.f32 %v1436, %v1452
    %v1455 = vpack.c.bf16 %v1454, %v1454
    %v1456 = vpack.c.bf16 %v1389, %v1389
    %1458 = vrot.lane.b32.xlu0 %v1456, 32
    %v1459 = vpop.permute.xlu0 %1458
    %v1461 = vsel %vm250, %v1459, 0
    %1463 = vmatprep.subr.bf16.mxu0 0
    %1464 = vmatpush1.bf16.msra.mxu0 %v336
    %1465 = vmatprep.subr.bf16.mxu0 0
    %1466 = vmatpush1.bf16.msra.mxu0 %v337
    %1467 = vmatprep.subr.bf16.mxu0 0
    %1468 = vmatpush1.bf16.msra.mxu0 0
    %1469 = vmatprep.subr.bf16.mxu0 0
    %1470 = vmatpush1.bf16.msra.mxu0 0
    %1471 = vmatprep.subr.bf16.mxu0 0
    %1472 = vmatpush1.bf16.msra.mxu0 0
    %1473 = vmatprep.subr.bf16.mxu0 0
    %1474 = vmatpush1.bf16.msra.mxu0 0
    %1475 = vmatprep.subr.bf16.mxu0 0
    %1476 = vmatpush1.bf16.msra.mxu0 0
    %1477 = vmatprep.subr.bf16.mxu0 0
    %1478 = vmatpush1.bf16.msra.mxu0 0
    %1479 = vmatprep.subr.bf16.mxu0 0
    %1480 = vmatpush1.bf16.msra.mxu0 0
    %1481 = vmatprep.subr.bf16.mxu0 0
    %1482 = vmatpush1.bf16.msra.mxu0 0
    %1483 = vmatprep.subr.bf16.mxu0 0
    %1484 = vmatpush1.bf16.msra.mxu0 0
    %1485 = vmatprep.subr.bf16.mxu0 0
    %1486 = vmatpush1.bf16.msra.mxu0 0
    %1487 = vmatprep.subr.bf16.mxu0 0
    %1488 = vmatpush1.bf16.msra.mxu0 0
    %1489 = vmatprep.subr.bf16.mxu0 0
    %1490 = vmatpush1.bf16.msra.mxu0 0
    %1491 = vmatprep.subr.bf16.mxu0 0
    %1492 = vmatpush1.bf16.msra.mxu0 0
    %1493 = vmatprep.subr.bf16.mxu0 0
    %1494 = vmatpush1.bf16.msra.mxu0 0
    %1495 = vmatprep.mubr.bf16.mxu0 0
    %1496 = vmatmul.mubr.bf16.gmra.mrb[0].mxu0 %v1461
    %v1497 = vpop.f32.mrb[0].mxu0
    %v1498 = vadd.f32 0.0, %v1497
    %v1499 = vpop.f32.mrb[0].mxu0
    %v1500 = vpop.f32.mrb[0].mxu0
    %v1501 = vpop.f32.mrb[0].mxu0
    %1502 = vdwg.mxu0
    %1504 = vrot.lane.b32.xlu0 %v1455, 32
    %v1505 = vpop.permute.xlu0 %1504
    %v1507 = vsel %vm250, %v1505, 0
    %1509 = vmatprep.subr.bf16.mxu0 0
    %1510 = vmatpush1.bf16.msra.mxu0 %v391
    %1511 = vmatprep.subr.bf16.mxu0 0
    %1512 = vmatpush1.bf16.msra.mxu0 %v392
    %1513 = vmatprep.subr.bf16.mxu0 0
    %1514 = vmatpush1.bf16.msra.mxu0 0
    %1515 = vmatprep.subr.bf16.mxu0 0
    %1516 = vmatpush1.bf16.msra.mxu0 0
    %1517 = vmatprep.subr.bf16.mxu0 0
    %1518 = vmatpush1.bf16.msra.mxu0 0
    %1519 = vmatprep.subr.bf16.mxu0 0
    %1520 = vmatpush1.bf16.msra.mxu0 0
    %1521 = vmatprep.subr.bf16.mxu0 0
    %1522 = vmatpush1.bf16.msra.mxu0 0
    %1523 = vmatprep.subr.bf16.mxu0 0
    %1524 = vmatpush1.bf16.msra.mxu0 0
    %1525 = vmatprep.subr.bf16.mxu0 0
    %1526 = vmatpush1.bf16.msra.mxu0 0
    %1527 = vmatprep.subr.bf16.mxu0 0
    %1528 = vmatpush1.bf16.msra.mxu0 0
    %1529 = vmatprep.subr.bf16.mxu0 0
    %1530 = vmatpush1.bf16.msra.mxu0 0
    %1531 = vmatprep.subr.bf16.mxu0 0
    %1532 = vmatpush1.bf16.msra.mxu0 0
    %1533 = vmatprep.subr.bf16.mxu0 0
    %1534 = vmatpush1.bf16.msra.mxu0 0
    %1535 = vmatprep.subr.bf16.mxu0 0
    %1536 = vmatpush1.bf16.msra.mxu0 0
    %1537 = vmatprep.subr.bf16.mxu0 0
    %1538 = vmatpush1.bf16.msra.mxu0 0
    %1539 = vmatprep.subr.bf16.mxu0 0
    %1540 = vmatpush1.bf16.msra.mxu0 0
    %1541 = vmatprep.mubr.bf16.mxu0 0
    %1542 = vmatmul.mubr.bf16.gmra.mrb[0].mxu0 %v1507
    %v1543 = vpop.f32.mrb[0].mxu0
    %v1544 = vadd.f32 %v1498, %v1543
    %v1545 = vpop.f32.mrb[0].mxu0
    %v1546 = vpop.f32.mrb[0].mxu0
    %v1547 = vpop.f32.mrb[0].mxu0
    %1548 = vdwg.mxu0
    %v1549 = vadd.f32 %v1544, %v443
    %v1550 = vxor.u32 %v1549, 2147483648
    %v1551 = vmul.f32 %v1550, 1.442695
    %v1552 = vpow.pop %v1551
    %v1553 = vadd.f32 %v1552, 1.0
    %v1554 = vrcp.pop %v1553
    %v1555 = vmul.f32 1.0, %v1554
    %v1556 = vtanh.pop %v1549
    %v1557 = vmul.f32 %v1555, %v1383
    %1559 = vrot.lane.b32.xlu0 %v1556, 64
    %v1560 = vpop.permute.xlu0 %1559
    %v1562 = vmul.f32 %v1555, %v1560
    %1564 = vrot.lane.b32.xlu0 %v1562, 32
    %v1565 = vpop.permute.xlu0 %1564
    %v1567 = vadd.f32 %v1557, %v1565
    %v1568 = vtanh.pop %v1567
    %1570 = vrot.lane.b32.xlu0 %v1568, 64
    %v1571 = vpop.permute.xlu0 %1570
    %v1573 = vmul.f32 %v1555, %v1571
    %1574 = vmatprep.subr.bf16.mxu0 0
    %1575 = vmatpush1.bf16.msra.mxu0 %v246
    %1576 = vmatprep.subr.bf16.mxu0 0
    %1577 = vmatpush1.bf16.msra.mxu0 %v247
    %1578 = vmatprep.subr.bf16.mxu0 0
    %1579 = vmatpush1.bf16.msra.mxu0 0
    %1580 = vmatprep.subr.bf16.mxu0 0
    %1581 = vmatpush1.bf16.msra.mxu0 0
    %1582 = vmatprep.subr.bf16.mxu0 0
    %1583 = vmatpush1.bf16.msra.mxu0 0
    %1584 = vmatprep.subr.bf16.mxu0 0
    %1585 = vmatpush1.bf16.msra.mxu0 0
    %1586 = vmatprep.subr.bf16.mxu0 0
    %1587 = vmatpush1.bf16.msra.mxu0 0
    %1588 = vmatprep.subr.bf16.mxu0 0
    %1589 = vmatpush1.bf16.msra.mxu0 0
    %1590 = vmatprep.subr.bf16.mxu0 0
    %1591 = vmatpush1.bf16.msra.mxu0 0
    %1592 = vmatprep.subr.bf16.mxu0 0
    %1593 = vmatpush1.bf16.msra.mxu0 0
    %1594 = vmatprep.subr.bf16.mxu0 0
    %1595 = vmatpush1.bf16.msra.mxu0 0
    %1596 = vmatprep.subr.bf16.mxu0 0
    %1597 = vmatpush1.bf16.msra.mxu0 0
    %1598 = vmatprep.subr.bf16.mxu0 0
    %1599 = vmatpush1.bf16.msra.mxu0 0
    %1600 = vmatprep.subr.bf16.mxu0 0
    %1601 = vmatpush1.bf16.msra.mxu0 0
    %1602 = vmatprep.subr.bf16.mxu0 0
    %1603 = vmatpush1.bf16.msra.mxu0 0
    %1604 = vmatprep.subr.bf16.mxu0 0
    %1605 = vmatpush1.bf16.msra.mxu0 0
    %1606 = vmatprep.mubr.bf16.mxu0 0
    %1607 = vmatmul.mubr.bf16.gmra.mrb[0].mxu0 %v1507
    %v1608 = vpop.f32.mrb[0].mxu0
    %v1609 = vadd.f32 0.0, %v1608
    %v1610 = vpop.f32.mrb[0].mxu0
    %v1611 = vpop.f32.mrb[0].mxu0
    %v1612 = vpop.f32.mrb[0].mxu0
    %1613 = vdwg.mxu0
    %v1614 = vadd.f32 %v231, %v1609
    %v1615 = vxor.u32 %v1614, 2147483648
    %v1616 = vmul.f32 %v1615, 1.442695
    %v1617 = vpow.pop %v1616
    %v1618 = vadd.f32 %v1617, 1.0
    %v1619 = vrcp.pop %v1618
    %v1620 = vmul.f32 1.0, %v1619
    %v1621 = vtanh.pop %v1614
    %v1622 = vmul.f32 %v1620, %v1448
    %1624 = vrot.lane.b32.xlu0 %v1621, 64
    %v1625 = vpop.permute.xlu0 %1624
    %v1627 = vmul.f32 %v1620, %v1625
    %1629 = vrot.lane.b32.xlu0 %v1627, 32
    %v1630 = vpop.permute.xlu0 %1629
    %v1632 = vadd.f32 %v1622, %v1630
    %v1633 = vtanh.pop %v1632
    %1635 = vrot.lane.b32.xlu0 %v1633, 64
    %v1636 = vpop.permute.xlu0 %1635
    %v1638 = vmul.f32 %v1620, %v1636
    %v1639 = vpack.c.bf16 %v1638, %v1638
    %v1640 = vpack.c.bf16 %v1573, %v1573
    %1642 = vrot.lane.b32.xlu0 %v1640, 32
    %v1643 = vpop.permute.xlu0 %1642
    %v1645 = vsel %vm250, %v1643, 0
    %1647 = vmatprep.subr.bf16.mxu0 0
    %1648 = vmatpush1.bf16.msra.mxu0 %v336
    %1649 = vmatprep.subr.bf16.mxu0 0
    %1650 = vmatpush1.bf16.msra.mxu0 %v337
    %1651 = vmatprep.subr.bf16.mxu0 0
    %1652 = vmatpush1.bf16.msra.mxu0 0
    %1653 = vmatprep.subr.bf16.mxu0 0
    %1654 = vmatpush1.bf16.msra.mxu0 0
    %1655 = vmatprep.subr.bf16.mxu0 0
    %1656 = vmatpush1.bf16.msra.mxu0 0
    %1657 = vmatprep.subr.bf16.mxu0 0
    %1658 = vmatpush1.bf16.msra.mxu0 0
    %1659 = vmatprep.subr.bf16.mxu0 0
    %1660 = vmatpush1.bf16.msra.mxu0 0
    %1661 = vmatprep.subr.bf16.mxu0 0
    %1662 = vmatpush1.bf16.msra.mxu0 0
    %1663 = vmatprep.subr.bf16.mxu0 0
    %1664 = vmatpush1.bf16.msra.mxu0 0
    %1665 = vmatprep.subr.bf16.mxu0 0
    %1666 = vmatpush1.bf16.msra.mxu0 0
    %1667 = vmatprep.subr.bf16.mxu0 0
    %1668 = vmatpush1.bf16.msra.mxu0 0
    %1669 = vmatprep.subr.bf16.mxu0 0
    %1670 = vmatpush1.bf16.msra.mxu0 0
    %1671 = vmatprep.subr.bf16.mxu0 0
    %1672 = vmatpush1.bf16.msra.mxu0 0
    %1673 = vmatprep.subr.bf16.mxu0 0
    %1674 = vmatpush1.bf16.msra.mxu0 0
    %1675 = vmatprep.subr.bf16.mxu0 0
    %1676 = vmatpush1.bf16.msra.mxu0 0
    %1677 = vmatprep.subr.bf16.mxu0 0
    %1678 = vmatpush1.bf16.msra.mxu0 0
    %1679 = vmatprep.mubr.bf16.mxu0 0
    %1680 = vmatmul.mubr.bf16.gmra.mrb[0].mxu0 %v1645
    %v1681 = vpop.f32.mrb[0].mxu0
    %v1682 = vadd.f32 0.0, %v1681
    %v1683 = vpop.f32.mrb[0].mxu0
    %v1684 = vpop.f32.mrb[0].mxu0
    %v1685 = vpop.f32.mrb[0].mxu0
    %1686 = vdwg.mxu0
    %1688 = vrot.lane.b32.xlu0 %v1639, 32
    %v1689 = vpop.permute.xlu0 %1688
    %v1691 = vsel %vm250, %v1689, 0
    %1693 = vmatprep.subr.bf16.mxu0 0
    %1694 = vmatpush1.bf16.msra.mxu0 %v391
    %1695 = vmatprep.subr.bf16.mxu0 0
    %1696 = vmatpush1.bf16.msra.mxu0 %v392
    %1697 = vmatprep.subr.bf16.mxu0 0
    %1698 = vmatpush1.bf16.msra.mxu0 0
    %1699 = vmatprep.subr.bf16.mxu0 0
    %1700 = vmatpush1.bf16.msra.mxu0 0
    %1701 = vmatprep.subr.bf16.mxu0 0
    %1702 = vmatpush1.bf16.msra.mxu0 0
    %1703 = vmatprep.subr.bf16.mxu0 0
    %1704 = vmatpush1.bf16.msra.mxu0 0
    %1705 = vmatprep.subr.bf16.mxu0 0
    %1706 = vmatpush1.bf16.msra.mxu0 0
    %1707 = vmatprep.subr.bf16.mxu0 0
    %1708 = vmatpush1.bf16.msra.mxu0 0
    %1709 = vmatprep.subr.bf16.mxu0 0
    %1710 = vmatpush1.bf16.msra.mxu0 0
    %1711 = vmatprep.subr.bf16.mxu0 0
    %1712 = vmatpush1.bf16.msra.mxu0 0
    %1713 = vmatprep.subr.bf16.mxu0 0
    %1714 = vmatpush1.bf16.msra.mxu0 0
    %1715 = vmatprep.subr.bf16.mxu0 0
    %1716 = vmatpush1.bf16.msra.mxu0 0
    %1717 = vmatprep.subr.bf16.mxu0 0
    %1718 = vmatpush1.bf16.msra.mxu0 0
    %1719 = vmatprep.subr.bf16.mxu0 0
    %1720 = vmatpush1.bf16.msra.mxu0 0
    %1721 = vmatprep.subr.bf16.mxu0 0
    %1722 = vmatpush1.bf16.msra.mxu0 0
    %1723 = vmatprep.subr.bf16.mxu0 0
    %1724 = vmatpush1.bf16.msra.mxu0 0
    %1725 = vmatprep.mubr.bf16.mxu0 0
    %1726 = vmatmul.mubr.bf16.gmra.mrb[0].mxu0 %v1691
    %v1727 = vpop.f32.mrb[0].mxu0
    %v1728 = vadd.f32 %v1682, %v1727
    %v1729 = vpop.f32.mrb[0].mxu0
    %v1730 = vpop.f32.mrb[0].mxu0
    %v1731 = vpop.f32.mrb[0].mxu0
    %1732 = vdwg.mxu0
    %v1733 = vadd.f32 %v1728, %v443
    %v1734 = vxor.u32 %v1733, 2147483648
    %v1735 = vmul.f32 %v1734, 1.442695
    %v1736 = vpow.pop %v1735
    %v1737 = vadd.f32 %v1736, 1.0
    %v1738 = vrcp.pop %v1737
    %v1739 = vmul.f32 1.0, %v1738
    %v1740 = vtanh.pop %v1733
    %v1741 = vmul.f32 %v1739, %v1567
    %1743 = vrot.lane.b32.xlu0 %v1740, 64
    %v1744 = vpop.permute.xlu0 %1743
    %v1746 = vmul.f32 %v1739, %v1744
    %1748 = vrot.lane.b32.xlu0 %v1746, 32
    %v1749 = vpop.permute.xlu0 %1748
    %v1751 = vadd.f32 %v1741, %v1749
    %v1752 = vtanh.pop %v1751
    %1754 = vrot.lane.b32.xlu0 %v1752, 64
    %v1755 = vpop.permute.xlu0 %1754
    %v1757 = vmul.f32 %v1739, %v1755
    %v1758 = vld [vmem:[%s0] sm:$0xff]
    %v1759 = vpack.c.bf16 %v1757, %v1757
    %v1760 = vld [vmem:[#allocation7] sm:$0xf]
    %v1761 = vld [vmem:[#allocation7 + $0x4] sm:$0xf]
    %v1762 = vld [vmem:[#allocation7 + $0x8] sm:$0xf]
    %v1763 = vld [vmem:[#allocation7 + $0xc] sm:$0xf]
    %v1764 = vld [vmem:[%s9] sm:$0x1]
    %v1766 = vlaneseq
    %v1767 = vshrl.u32 %v1766, 7
    %v1768 = vsub.s32 0, %v1767
    %v1769 = vrot.slane %v1764, %v1768
    %1772 = vrot.lane.b32.xlu0 %v1759, 32
    %v1773 = vpop.permute.xlu0 %1772
    %v1778 = vunpack.c.l.b16 %v1760
    %v1779 = vunpack.c.l.b16 %v1761
    %v1780 = vunpack.c.l.b16 %v1762
    %v1781 = vunpack.c.l.b16 %v1763
    %v1782 = vpack.c.b16 %v1779, %v1778
    %v1783 = vpack.c.b16 %v1781, %v1780
    %v1787 = vsel %vm250, %v1773, 0
    %1789 = vmatprep.subr.bf16.mxu0 0
    %1790 = vmatpush1.bf16.msra.mxu0 %v1782
    %1791 = vmatprep.subr.bf16.mxu0 0
    %1792 = vmatpush1.bf16.msra.mxu0 %v1783
    %1793 = vmatprep.subr.bf16.mxu0 0
    %1794 = vmatpush1.bf16.msra.mxu0 0
    %1795 = vmatprep.subr.bf16.mxu0 0
    %1796 = vmatpush1.bf16.msra.mxu0 0
    %1797 = vmatprep.subr.bf16.mxu0 0
    %1798 = vmatpush1.bf16.msra.mxu0 0
    %1799 = vmatprep.subr.bf16.mxu0 0
    %1800 = vmatpush1.bf16.msra.mxu0 0
    %1801 = vmatprep.subr.bf16.mxu0 0
    %1802 = vmatpush1.bf16.msra.mxu0 0
    %1803 = vmatprep.subr.bf16.mxu0 0
    %1804 = vmatpush1.bf16.msra.mxu0 0
    %1805 = vmatprep.subr.bf16.mxu0 0
    %1806 = vmatpush1.bf16.msra.mxu0 0
    %1807 = vmatprep.subr.bf16.mxu0 0
    %1808 = vmatpush1.bf16.msra.mxu0 0
    %1809 = vmatprep.subr.bf16.mxu0 0
    %1810 = vmatpush1.bf16.msra.mxu0 0
    %1811 = vmatprep.subr.bf16.mxu0 0
    %1812 = vmatpush1.bf16.msra.mxu0 0
    %1813 = vmatprep.subr.bf16.mxu0 0
    %1814 = vmatpush1.bf16.msra.mxu0 0
    %1815 = vmatprep.subr.bf16.mxu0 0
    %1816 = vmatpush1.bf16.msra.mxu0 0
    %1817 = vmatprep.subr.bf16.mxu0 0
    %1818 = vmatpush1.bf16.msra.mxu0 0
    %1819 = vmatprep.subr.bf16.mxu0 0
    %1820 = vmatpush1.bf16.msra.mxu0 0
    %1821 = vmatprep.mubr.bf16.mxu0 0
    %1822 = vmatmul.mubr.bf16.gmra.mrb[0].mxu0 %v1787
    %v1823 = vpop.f32.mrb[0].mxu0
    %v1824 = vadd.f32 %v1769, %v1823
    %v1825 = vpop.f32.mrb[0].mxu0
    %v1826 = vpop.f32.mrb[0].mxu0
    %v1827 = vpop.f32.mrb[0].mxu0
    %1828 = vdwg.mxu0
    %1830 = vset.pattern.permute.xlu0 0
    %1831 = vperm.xlu0 %1830, %v1758
    %v1832 = vpop.permute.xlu0 %1831
    %v1834 = vmul.f32 %v1824, %v1832
    %v1835 = vrot.slane %v1834, 4
    %v1836 = vadd.f32 %v1834, %v1835
    %v1837 = vrot.slane %v1836, 2
    %v1838 = vadd.f32 %v1836, %v1837
    %v1839 = vrot.slane %v1838, 1
    %v1840 = vadd.f32 %v1838, %v1839
    %v1841 = vsub.f32 %v1824, %v1840
    %v1842 = vmul.f32 %v1841, %v1841
    %v1843 = vmul.f32 %v1842, %v1832
    %v1844 = vrot.slane %v1843, 4
    %v1845 = vadd.f32 %v1843, %v1844
    %v1846 = vrot.slane %v1845, 2
    %v1847 = vadd.f32 %v1845, %v1846
    %v1848 = vrot.slane %v1847, 1
    %v1849 = vadd.f32 %v1847, %v1848
    %v1850 = vld [vmem:[%s10] sm:$0x1]
    %v1852 = vlaneseq
    %v1853 = vshrl.u32 %v1852, 7
    %v1854 = vsub.s32 0, %v1853
    %v1855 = vrot.slane %v1850, %v1854
    %v1857 = vmul.f32 %v1855, %v1841
    %v1858 = vadd.f32 %v1849, 1e-05
    %v1859 = vrsqrt.pop %v1858
    %v1860 = vmul.f32 %v1857, %v1859
    %v1861 = vld [vmem:[%s11] sm:$0x1]
    %v1863 = vlaneseq
    %v1864 = vshrl.u32 %v1863, 7
    %v1865 = vsub.s32 0, %v1864
    %v1866 = vrot.slane %v1861, %v1865
    %v1868 = vadd.f32 %v1860, %v1866
    %v1869 = vmax.f32 %v1868, 0.0
    %v1870 = vpack.c.bf16 %v1869, %v1869
    %v1871 = vld [vmem:[%s12] sm:$0xf]
    %v1872 = vld [vmem:[%s12 + $0x4] sm:$0xf]
    %v1873 = vld [vmem:[%s12 + $0x8] sm:$0xf]
    %v1874 = vld [vmem:[%s12 + $0xc] sm:$0xf]
    %v1875 = vld [vmem:[%s12 + $0x10] sm:$0xf]
    %v1876 = vld [vmem:[%s12 + $0x14] sm:$0xf]
    %v1877 = vld [vmem:[%s12 + $0x18] sm:$0xf]
    %v1878 = vld [vmem:[%s12 + $0x1c] sm:$0xf]
    %v1879 = vld [vmem:[%s12 + $0x20] sm:$0xf]
    %v1880 = vld [vmem:[%s12 + $0x24] sm:$0xf]
    %v1881 = vld [vmem:[%s12 + $0x28] sm:$0xf]
    %v1882 = vld [vmem:[%s12 + $0x2c] sm:$0xf]
    %v1883 = vld [vmem:[%s12 + $0x30] sm:$0xf]
    %v1884 = vld [vmem:[%s12 + $0x34] sm:$0xf]
    %v1885 = vld [vmem:[%s12 + $0x38] sm:$0xf]
    %v1886 = vld [vmem:[%s12 + $0x3c] sm:$0xf]
    %v1887 = vld [vmem:[%s13] sm:$0x1]
    %v1889 = vlaneseq
    %v1890 = vshrl.u32 %v1889, 7
    %v1891 = vsub.s32 0, %v1890
    %v1892 = vrot.slane %v1887, %v1891
    %v1910 = vunpack.c.l.b16 %v1871
    %v1911 = vunpack.c.l.b16 %v1872
    %v1912 = vunpack.c.l.b16 %v1873
    %v1913 = vunpack.c.l.b16 %v1874
    %v1914 = vunpack.c.l.b16 %v1875
    %v1915 = vunpack.c.l.b16 %v1876
    %v1916 = vunpack.c.l.b16 %v1877
    %v1917 = vunpack.c.l.b16 %v1878
    %v1918 = vunpack.c.l.b16 %v1879
    %v1919 = vunpack.c.l.b16 %v1880
    %v1920 = vunpack.c.l.b16 %v1881
    %v1921 = vunpack.c.l.b16 %v1882
    %v1922 = vunpack.c.l.b16 %v1883
    %v1923 = vunpack.c.l.b16 %v1884
    %v1924 = vunpack.c.l.b16 %v1885
    %v1925 = vunpack.c.l.b16 %v1886
    %v1926 = vpack.c.b16 %v1911, %v1910
    %v1927 = vpack.c.b16 %v1913, %v1912
    %v1928 = vpack.c.b16 %v1915, %v1914
    %v1929 = vpack.c.b16 %v1917, %v1916
    %v1930 = vpack.c.b16 %v1919, %v1918
    %v1931 = vpack.c.b16 %v1921, %v1920
    %v1932 = vpack.c.b16 %v1923, %v1922
    %v1933 = vpack.c.b16 %v1925, %v1924
    %1942 = vmatprep.subr.bf16.mxu0 0
    %1943 = vmatpush1.bf16.msra.mxu0 %v1926
    %1944 = vmatprep.subr.bf16.mxu0 0
    %1945 = vmatpush1.bf16.msra.mxu0 %v1927
    %1946 = vmatprep.subr.bf16.mxu0 0
    %1947 = vmatpush1.bf16.msra.mxu0 %v1928
    %1948 = vmatprep.subr.bf16.mxu0 0
    %1949 = vmatpush1.bf16.msra.mxu0 %v1929
    %1950 = vmatprep.subr.bf16.mxu0 0
    %1951 = vmatpush1.bf16.msra.mxu0 %v1930
    %1952 = vmatprep.subr.bf16.mxu0 0
    %1953 = vmatpush1.bf16.msra.mxu0 %v1931
    %1954 = vmatprep.subr.bf16.mxu0 0
    %1955 = vmatpush1.bf16.msra.mxu0 %v1932
    %1956 = vmatprep.subr.bf16.mxu0 0
    %1957 = vmatpush1.bf16.msra.mxu0 %v1933
    %1958 = vmatprep.subr.bf16.mxu0 0
    %1959 = vmatpush1.bf16.msra.mxu0 0
    %1960 = vmatprep.subr.bf16.mxu0 0
    %1961 = vmatpush1.bf16.msra.mxu0 0
    %1962 = vmatprep.subr.bf16.mxu0 0
    %1963 = vmatpush1.bf16.msra.mxu0 0
    %1964 = vmatprep.subr.bf16.mxu0 0
    %1965 = vmatpush1.bf16.msra.mxu0 0
    %1966 = vmatprep.subr.bf16.mxu0 0
    %1967 = vmatpush1.bf16.msra.mxu0 0
    %1968 = vmatprep.subr.bf16.mxu0 0
    %1969 = vmatpush1.bf16.msra.mxu0 0
    %1970 = vmatprep.subr.bf16.mxu0 0
    %1971 = vmatpush1.bf16.msra.mxu0 0
    %1972 = vmatprep.subr.bf16.mxu0 0
    %1973 = vmatpush1.bf16.msra.mxu0 0
    %1974 = vmatprep.mubr.bf16.mxu0 0
    %1975 = vmatmul.mubr.bf16.gmra.mrb[0].mxu0 %v1870
    %v1976 = vpop.f32.mrb[0].mxu0
    %v1977 = vadd.f32 %v1892, %v1976
    %v1978 = vpop.f32.mrb[0].mxu0
    %v1979 = vpop.f32.mrb[0].mxu0
    %v1980 = vpop.f32.mrb[0].mxu0
    %1981 = vdwg.mxu0
    %v1982 = vmul.f32 %v1977, %v1832
    %v1983 = vrot.slane %v1982, 4
    %v1984 = vadd.f32 %v1982, %v1983
    %v1985 = vrot.slane %v1984, 2
    %v1986 = vadd.f32 %v1984, %v1985
    %v1987 = vrot.slane %v1986, 1
    %v1988 = vadd.f32 %v1986, %v1987
    %v1989 = vsub.f32 %v1977, %v1988
    %v1990 = vmul.f32 %v1989, %v1989
    %v1991 = vmul.f32 %v1990, %v1832
    %v1992 = vrot.slane %v1991, 4
    %v1993 = vadd.f32 %v1991, %v1992
    %v1994 = vrot.slane %v1993, 2
    %v1995 = vadd.f32 %v1993, %v1994
    %v1996 = vrot.slane %v1995, 1
    %v1997 = vadd.f32 %v1995, %v1996
    %v1998 = vld [vmem:[%s14] sm:$0x1]
    %v2000 = vlaneseq
    %v2001 = vshrl.u32 %v2000, 7
    %v2002 = vsub.s32 0, %v2001
    %v2003 = vrot.slane %v1998, %v2002
    %v2005 = vmul.f32 %v2003, %v1989
    %v2006 = vadd.f32 %v1997, 1e-05
    %v2007 = vrsqrt.pop %v2006
    %v2008 = vmul.f32 %v2005, %v2007
    %v2009 = vld [vmem:[%s15] sm:$0x1]
    %v2011 = vlaneseq
    %v2012 = vshrl.u32 %v2011, 7
    %v2013 = vsub.s32 0, %v2012
    %v2014 = vrot.slane %v2009, %v2013
    %v2016 = vadd.f32 %v2008, %v2014
    %v2017 = vmax.f32 %v2016, 0.0
    %v2018 = vpack.c.bf16 %v2017, %v2017
    %v2019 = vld [vmem:[#allocation8] sm:$0xf]
    %v2020 = vld [vmem:[#allocation8 + $0x4] sm:$0xf]
    %v2021 = vld [vmem:[#allocation8 + $0x8] sm:$0xf]
    %v2022 = vld [vmem:[#allocation8 + $0xc] sm:$0xf]
    %v2023 = vld [vmem:[#allocation8 + $0x10] sm:$0xf]
    %v2024 = vld [vmem:[#allocation8 + $0x14] sm:$0xf]
    %v2025 = vld [vmem:[#allocation8 + $0x18] sm:$0xf]
    %v2026 = vld [vmem:[#allocation8 + $0x1c] sm:$0xf]
    %v2027 = vld [vmem:[#allocation8 + $0x20] sm:$0xf]
    %v2028 = vld [vmem:[#allocation8 + $0x24] sm:$0xf]
    %v2029 = vld [vmem:[#allocation8 + $0x28] sm:$0xf]
    %v2030 = vld [vmem:[#allocation8 + $0x2c] sm:$0xf]
    %v2031 = vld [vmem:[#allocation8 + $0x30] sm:$0xf]
    %v2032 = vld [vmem:[#allocation8 + $0x34] sm:$0xf]
    %v2033 = vld [vmem:[#allocation8 + $0x38] sm:$0xf]
    %v2034 = vld [vmem:[#allocation8 + $0x3c] sm:$0xf]
    %v2035 = vld [vmem:[%s17] sm:$0x1]
    %v2037 = vlaneseq
    %v2038 = vshrl.u32 %v2037, 7
    %v2039 = vsub.s32 0, %v2038
    %v2040 = vrot.slane %v2035, %v2039
    %v2058 = vunpack.c.l.b16 %v2019
    %v2059 = vunpack.c.l.b16 %v2020
    %v2060 = vunpack.c.l.b16 %v2021
    %v2061 = vunpack.c.l.b16 %v2022
    %v2062 = vunpack.c.l.b16 %v2023
    %v2063 = vunpack.c.l.b16 %v2024
    %v2064 = vunpack.c.l.b16 %v2025
    %v2065 = vunpack.c.l.b16 %v2026
    %v2066 = vunpack.c.l.b16 %v2027
    %v2067 = vunpack.c.l.b16 %v2028
    %v2068 = vunpack.c.l.b16 %v2029
    %v2069 = vunpack.c.l.b16 %v2030
    %v2070 = vunpack.c.l.b16 %v2031
    %v2071 = vunpack.c.l.b16 %v2032
    %v2072 = vunpack.c.l.b16 %v2033
    %v2073 = vunpack.c.l.b16 %v2034
    %v2074 = vpack.c.b16 %v2059, %v2058
    %v2075 = vpack.c.b16 %v2061, %v2060
    %v2076 = vpack.c.b16 %v2063, %v2062
    %v2077 = vpack.c.b16 %v2065, %v2064
    %v2078 = vpack.c.b16 %v2067, %v2066
    %v2079 = vpack.c.b16 %v2069, %v2068
    %v2080 = vpack.c.b16 %v2071, %v2070
    %v2081 = vpack.c.b16 %v2073, %v2072
    %2090 = vmatprep.subr.bf16.mxu0 0
    %2091 = vmatpush1.bf16.msra.mxu0 %v2074
    %2092 = vmatprep.subr.bf16.mxu0 0
    %2093 = vmatpush1.bf16.msra.mxu0 %v2075
    %2094 = vmatprep.subr.bf16.mxu0 0
    %2095 = vmatpush1.bf16.msra.mxu0 %v2076
    %2096 = vmatprep.subr.bf16.mxu0 0
    %2097 = vmatpush1.bf16.msra.mxu0 %v2077
    %2098 = vmatprep.subr.bf16.mxu0 0
    %2099 = vmatpush1.bf16.msra.mxu0 %v2078
    %2100 = vmatprep.subr.bf16.mxu0 0
    %2101 = vmatpush1.bf16.msra.mxu0 %v2079
    %2102 = vmatprep.subr.bf16.mxu0 0
    %2103 = vmatpush1.bf16.msra.mxu0 %v2080
    %2104 = vmatprep.subr.bf16.mxu0 0
    %2105 = vmatpush1.bf16.msra.mxu0 %v2081
    %2106 = vmatprep.subr.bf16.mxu0 0
    %2107 = vmatpush1.bf16.msra.mxu0 0
    %2108 = vmatprep.subr.bf16.mxu0 0
    %2109 = vmatpush1.bf16.msra.mxu0 0
    %2110 = vmatprep.subr.bf16.mxu0 0
    %2111 = vmatpush1.bf16.msra.mxu0 0
    %2112 = vmatprep.subr.bf16.mxu0 0
    %2113 = vmatpush1.bf16.msra.mxu0 0
    %2114 = vmatprep.subr.bf16.mxu0 0
    %2115 = vmatpush1.bf16.msra.mxu0 0
    %2116 = vmatprep.subr.bf16.mxu0 0
    %2117 = vmatpush1.bf16.msra.mxu0 0
    %2118 = vmatprep.subr.bf16.mxu0 0
    %2119 = vmatpush1.bf16.msra.mxu0 0
    %2120 = vmatprep.subr.bf16.mxu0 0
    %2121 = vmatpush1.bf16.msra.mxu0 0
    %2122 = vmatprep.mubr.bf16.mxu0 0
    %2123 = vmatmul.mubr.bf16.gmra.mrb[0].mxu0 %v2018
    %v2124 = vpop.f32.mrb[0].mxu0
    %v2125 = vadd.f32 %v2040, %v2124
    %v2126 = vpop.f32.mrb[0].mxu0
    %v2127 = vpop.f32.mrb[0].mxu0
    %v2128 = vpop.f32.mrb[0].mxu0
    %2129 = vdwg.mxu0
    %2130 = vst [vmem:[#allocation10] sm:$0xff] %v2125
    // Predicated region
    $region90: #{tpu_custom_call.1} parent=1 // pred_check
      _
    $region91: #{tpu_custom_call.1} parent=1 // pred_check_branch
      %2132 = sbr.rel (0) target = $region93
    $region92: #{tpu_custom_call.1} parent=1 // pred_region
      %s2134 = ssub.s32 128, 128
      %2135 = vsyncadd [#allocation4], %s2134
      %s2137 = sshll.u32 [#allocation10], 4
      %s2138 = int_to_ptr.vmem [resolvable:$true] %s2137
      %2140 = dma.vmem_to_hbm [thread:$0]  %s2138, 128, %s18, [#allocation4]
    $region93: #{tpu_custom_call.1} parent=1 // pred_fallthru
      _
    // Predicated region
    $region94: #{tpu_custom_call.1} parent=1 // pred_check
      _
    $region95: #{tpu_custom_call.1} parent=1 // pred_check_branch
      %2142 = sbr.rel (0) target = $region97
    $region96: #{tpu_custom_call.1} parent=1 // pred_region
      %2143 = dma.done [#allocation4], 128
    $region97: #{tpu_custom_call.1} parent=1 // pred_fallthru
      _
    %2144 = vsyncpa [#allocation3], 1
    %2145 = vsyncpa [#allocation6], 1
    %2146 = vsyncpa [#allocation9], 1
    %2147 = vsyncpa [#allocation4], 1

</llo_original>
